<compile_context>
chip_gen: v7x
topology: tpu7x:2x2x1
jax: 0.10.0
libtpu: 0.0.40
codegen_flags: <defaults>
</compile_context>

<pallas_src>
import functools

import jax
import jax.numpy as jnp
from jax.experimental import pallas as pl
from jax.experimental.pallas import tpu as pltpu


# --------------------------------------------------------------------------- #
# Kernel
# --------------------------------------------------------------------------- #
def _warp_kernel(x_ref, vgrid_ref, out_ref, mask_ref, acc_ref, *, H, W, TK):
    """One (batch item, output-pixel tile, source-pixel tile) per grid step.

    x_ref:     (C, TK)  source-pixel slice of the image to warp (im2)
    vgrid_ref: (2, TN)  sampling coordinates (grid + flow) for this output tile
    out_ref:   (C, TN)  warped & masked output tile          (written at k==last)
    mask_ref:  (1, TN)  validity mask (1.0 inside, 0.0 out)  (written at k==last)
    acc_ref:   (C, TN)  f32 accumulator scratch (resident across the k axis)
    """
    k = pl.program_id(2)

    @pl.when(k == 0)
    def _init():
        acc_ref[...] = jnp.zeros_like(acc_ref)

    vg = vgrid_ref[...].astype(jnp.float32)          # (2, TN)
    ix = vg[0:1, :]                                  # (1, TN) sample x
    iy = vg[1:2, :]                                  # (1, TN) sample y

    x0 = jnp.floor(ix)
    y0 = jnp.floor(iy)
    wx1 = ix - x0
    wx0 = 1.0 - wx1
    wy1 = iy - y0
    wy0 = 1.0 - wy1

    # Corner flat indices in tile-local source coordinates (cheap (1,TN) ops).
    # No clipping / in-bounds zeroing: every pixel where some corner is OOB is
    # outside the validity mask, and the final output is multiplied by the mask.
    base = k * TK
    i00 = y0.astype(jnp.int32) * W + x0.astype(jnp.int32) - base
    i01 = i00 + 1
    i10 = i00 + W
    i11 = i10 + 1
    w00 = wy0 * wx0
    w01 = wy0 * wx1
    w10 = wy1 * wx0
    w11 = wy1 * wx1

    # S[q, p] = bilinear weight of (tile-local) source pixel q for output pixel
    # p.  Single chained select: 1 iota + 4 compares + 4 selects on (TK, TN).
    TN = ix.shape[1]
    q = jax.lax.broadcasted_iota(jnp.int32, (TK, TN), 0)
    S = jnp.where(q == i11, w11,
        jnp.where(q == i10, w10,
        jnp.where(q == i01, w01,
        jnp.where(q == i00, w00, 0.0))))

    # Partial bilinear sample: (C, TK) @ (TK, TN) -> accumulate into (C, TN).
    acc_ref[...] += jnp.dot(x_ref[...].astype(jnp.float32), S,
                            preferred_element_type=jnp.float32,
                            precision=jax.lax.Precision.HIGHEST)

    @pl.when(k == pl.num_programs(2) - 1)
    def _finalize():
        # |2*v/(D-1) - 1| < 1  <=>  0 < v < D-1 (strict).
        mask = ((ix > 0.0) & (ix < W - 1.0)
                & (iy > 0.0) & (iy < H - 1.0)).astype(jnp.float32)
        out_ref[...] = (acc_ref[...] * mask).astype(out_ref.dtype)
        mask_ref[...] = mask


# --------------------------------------------------------------------------- #
# Tile / VMEM planning
# --------------------------------------------------------------------------- #
def _vmem_capacity_bytes():
    """Physical VMEM of the current generation (conservative fallback: v7x)."""
    try:
        info = pltpu.get_tpu_info()
        cap = getattr(info, "vmem_capacity_bytes", None)
        if cap:
            return int(cap)
    except Exception:
        pass
    return 64 * 1024 * 1024


def _estimate_vmem(C, TK, TN, x_itemsize, out_itemsize):
    """Per-step VMEM bytes (double-buffered input/output blocks included)."""
    s_slab = 3 * TK * TN * 4                       # S + live select/iota slabs
    x_blk = 2 * C * TK * x_itemsize                # image block (2 buffers)
    vg_blk = 2 * 2 * TN * 4                        # vgrid block (2 buffers)
    out_blk = 2 * (C * TN * out_itemsize + TN * 4)  # out + mask blocks (2 bufs)
    acc = C * TN * 4                               # accumulator scratch
    return s_slab + x_blk + vg_blk + out_blk + acc


def _largest_tile(HW_p, cap):
    """Largest multiple of 128 that divides HW_p and is <= cap (HW_p % 128 == 0)."""
    t = max(128, min(cap, HW_p))
    t = (t // 128) * 128
    while t > 128 and HW_p % t != 0:
        t -= 128
    return t


def _pick_tiles(C, HW_p, x_itemsize, out_itemsize, budget_bytes):
    """Pick (TK source-pixel tile, TN output-pixel tile) under a VMEM budget."""
    tn_cap = 1024 if budget_bytes >= 80 * 1024 * 1024 else 512
    tn = _largest_tile(HW_p, tn_cap)
    tk = _largest_tile(HW_p, 4096)
    while tk > 128 and _estimate_vmem(C, tk, tn, x_itemsize, out_itemsize) > budget_bytes:
        tk = _largest_tile(HW_p, tk - 128)
    while tn > 128 and _estimate_vmem(C, tk, tn, x_itemsize, out_itemsize) > budget_bytes:
        tn = _largest_tile(HW_p, tn - 128)
    return tk, tn


# --------------------------------------------------------------------------- #
# Wrapper
# --------------------------------------------------------------------------- #
def warp(x, flo, *, tk=None, tn=None, vmem_limit_bytes=None):
    """x: (B, C, H, W), flo: (B, 2, H, W) -> (warped (B,C,H,W), mask bool (B,H,W))."""
    B, C, H, W = x.shape
    assert flo.shape == (B, 2, H, W), (x.shape, flo.shape)
    HW = H * W
    HW_p = ((HW + 127) // 128) * 128          # pad the lane axis to 128-multiple
    pad = HW_p - HW

    # vgrid = base grid + flow (align_corners=True: normalize/un-normalize cancel
    # exactly, so sampling happens directly at grid + flow).  One tiny fused XLA
    # elementwise op; keeps the kernel free of flat-index -> (y, x) recovery.
    xx = jnp.broadcast_to(jnp.arange(W, dtype=jnp.float32)[None, :], (H, W))
    yy = jnp.broadcast_to(jnp.arange(H, dtype=jnp.float32)[:, None], (H, W))
    grid = jnp.stack([xx, yy], axis=0)                         # (2, H, W)
    vgrid = (grid[None] + flo.astype(jnp.float32)).reshape(B, 2, HW)

    x_flat = x.reshape(B, C, HW)
    if pad:
        x_flat = jnp.pad(x_flat, ((0, 0), (0, 0), (0, pad)))
        vgrid = jnp.pad(vgrid, ((0, 0), (0, 0), (0, pad)))

    x_isz = jnp.dtype(x.dtype).itemsize
    cap = _vmem_capacity_bytes()
    budget = int(cap * 0.70)
    tk_auto, tn_auto = _pick_tiles(C, HW_p, x_isz, x_isz, budget)
    tk = tk_auto if tk is None else tk
    tn = tn_auto if tn is None else tn
    assert HW_p % tk == 0 and tk % 128 == 0, (HW_p, tk)
    assert HW_p % tn == 0 and tn % 128 == 0, (HW_p, tn)

    if vmem_limit_bytes is None:
        est = _estimate_vmem(C, tk, tn, x_isz, x_isz)
        vmem_limit_bytes = min(int(cap * 0.90), max(est + (16 << 20), 32 << 20))

    n_t = HW_p // tn
    n_k = HW_p // tk
    kernel = functools.partial(_warp_kernel, H=H, W=W, TK=tk)

    out_flat, mask_flat = pl.pallas_call(
        kernel,
        out_shape=(
            jax.ShapeDtypeStruct((B, C, HW_p), x.dtype),
            jax.ShapeDtypeStruct((B, 1, HW_p), jnp.float32),
        ),
        grid=(B, n_t, n_k),
        in_specs=[
            # Image: only the current source-pixel (contraction) tile.
            pl.BlockSpec((None, C, tk), lambda b, t, k: (b, 0, k)),
            # Sampling coordinates: only the current output tile (constant in k).
            pl.BlockSpec((None, 2, tn), lambda b, t, k: (b, 0, t)),
        ],
        out_specs=(
            pl.BlockSpec((None, C, tn), lambda b, t, k: (b, 0, t)),
            pl.BlockSpec((None, 1, tn), lambda b, t, k: (b, 0, t)),
        ),
        scratch_shapes=[pltpu.VMEM((C, tn), jnp.float32)],
        compiler_params=pltpu.CompilerParams(
            dimension_semantics=("parallel", "parallel", "arbitrary"),
            vmem_limit_bytes=int(vmem_limit_bytes),
        ),
    )(x_flat, vgrid)

    out = out_flat[:, :, :HW].reshape(B, C, H, W)
    mask = mask_flat[:, 0, :HW].reshape(B, H, W) > 0.0
    return out, mask


# --------------------------------------------------------------------------- #
# Pure-JAX reference (grid_sample, align_corners=True, padding_mode='zeros')
# --------------------------------------------------------------------------- #
def warp_reference(x, flo):
    B, C, H, W = x.shape
    xx = jnp.broadcast_to(jnp.arange(W, dtype=jnp.float32)[None, :], (H, W))
    yy = jnp.broadcast_to(jnp.arange(H, dtype=jnp.float32)[:, None], (H, W))
    ix = xx[None] + flo[:, 0]
    iy = yy[None] + flo[:, 1]
    mask = (ix > 0.0) & (ix < W - 1.0) & (iy > 0.0) & (iy < H - 1.0)

    x0 = jnp.floor(ix); x1 = x0 + 1.0
    y0 = jnp.floor(iy); y1 = y0 + 1.0
    wx1 = ix - x0; wx0 = 1.0 - wx1
    wy1 = iy - y0; wy0 = 1.0 - wy1

    def sample_one(xb, yc, xc):
        inb = (xc >= 0) & (xc <= W - 1) & (yc >= 0) & (yc <= H - 1)
        xi = jnp.clip(xc, 0, W - 1).astype(jnp.int32)
        yi = jnp.clip(yc, 0, H - 1).astype(jnp.int32)
        v = xb[:, yi, xi]                      # (C, H, W)
        return v * inb[None].astype(x.dtype)

    def per_batch(xb, y0b, x0b, y1b, x1b, w00, w01, w10, w11):
        return (sample_one(xb, y0b, x0b) * w00[None]
                + sample_one(xb, y0b, x1b) * w01[None]
                + sample_one(xb, y1b, x0b) * w10[None]
                + sample_one(xb, y1b, x1b) * w11[None])

    out = jax.vmap(per_batch)(x, y0, x0, y1, x1,
                              wy0 * wx0, wy0 * wx1, wy1 * wx0, wy1 * wx1)
    out = out * mask[:, None].astype(x.dtype)
    return out, mask


# --------------------------------------------------------------------------- #
# Test
# --------------------------------------------------------------------------- #
def _check(x, flo, **kw):
    B, C, H, W = x.shape
    ref_out, ref_mask = warp_reference(x, flo)
    out, mask = warp(x, flo, **kw)
    out = jax.block_until_ready(out)
    mask = jax.block_until_ready(mask)
    assert out.shape == (B, C, H, W) and mask.shape == (B, H, W)
    assert mask.dtype == jnp.bool_
    assert bool(jnp.all(mask == ref_mask))
    assert bool(jnp.allclose(out, ref_out, atol=1e-4, rtol=1e-4))


if __name__ == "__main__":
    key = jax.random.PRNGKey(0)
    kx, kf, kx2, kf2 = jax.random.split(key, 4)

    # Case 1: 128-aligned HW (16x16 = 256).  Flow of a few pixels; some samples
    # land out of bounds (tests zero padding + mask).
    B, C, H, W = 2, 4, 16, 16
    x = jax.random.normal(kx, (B, C, H, W), dtype=jnp.float32)
    flo = 4.0 * jax.random.normal(kf, (B, 2, H, W), dtype=jnp.float32)
    _check(x, flo)                       # default tiles: single 256-wide tile
    _check(x, flo, tk=128, tn=128)       # multi-tile output + k-accumulation

    # Case 2: HW not a multiple of 128 (12x12 = 144 -> padded to 256); exercises
    # the wrapper padding path.
    H2 = W2 = 12
    x2 = jax.random.normal(kx2, (B, C, H2, W2), dtype=jnp.float32)
    flo2 = 3.0 * jax.random.normal(kf2, (B, 2, H2, W2), dtype=jnp.float32)
    _check(x2, flo2)

    print("KERNEL_OK")
</pallas_src>

<mosaic_0001>
module attributes {stable_mosaic.version = 11 : i64} {
  func.func @_warp_kernel(%arg0: i32, %arg1: i32, %arg2: i32, %arg3: memref<1x4x256xf32, #tpu.memory_space<vmem>>, %arg4: memref<1x2x256xf32, #tpu.memory_space<vmem>>, %arg5: memref<1x4x256xf32, #tpu.memory_space<vmem>>, %arg6: memref<1x1x256xf32, #tpu.memory_space<vmem>>, %arg7: memref<4x256xf32, #tpu.memory_space<vmem>>) attributes {dimension_semantics = [#tpu.dimension_semantics<parallel>, #tpu.dimension_semantics<parallel>, #tpu.dimension_semantics<arbitrary>], iteration_bounds = array<i64: 2, 1, 1>, scalar_prefetch = 0 : i64, scratch_operands = 1 : i64, tpu.core_type = #tpu.core_type<tc>, window_params = [{transform_indices = @transform_0, window_bounds = array<i64: 1, 4, 256>}, {transform_indices = @transform_1, window_bounds = array<i64: 1, 2, 256>}, {transform_indices = @transform_2, window_bounds = array<i64: 1, 4, 256>}, {transform_indices = @transform_3, window_bounds = array<i64: 1, 1, 256>}]} {
    %c0_i32 = arith.constant 0 : i32
    %0 = arith.cmpi eq, %arg2, %c0_i32 : i32
    %1 = arith.extui %0 : i1 to i32
    %c0_i32_0 = arith.constant 0 : i32
    %2 = arith.cmpi ne, %1, %c0_i32_0 : i32
    scf.if %2 {
      %cst_17 = arith.constant 0.000000e+00 : f32
      %64 = vector.broadcast %cst_17 : f32 to vector<4x256xf32>
      %c0_18 = arith.constant 0 : index
      %c0_19 = arith.constant 0 : index
      %65 = vector.load %arg7[%c0_18, %c0_19] : memref<4x256xf32, #tpu.memory_space<vmem>>, vector<4x256xf32>
      tpu.vector_store %arg7[%c0_18, %c0_19], %64 {strides = array<i32>} : memref<4x256xf32, #tpu.memory_space<vmem>>, vector<4x256xf32>,
    } else {
    }
    %c0 = arith.constant 0 : index
    %c0_1 = arith.constant 0 : index
    %c0_2 = arith.constant 0 : index
    %3 = vector.load %arg4[%c0, %c0_1, %c0_2] : memref<1x2x256xf32, #tpu.memory_space<vmem>>, vector<1x2x256xf32>
    %4 = vector.shape_cast %3 : vector<1x2x256xf32> to vector<2x256xf32>
    %5 = vector.extract_strided_slice %4 {offsets = [0, 0], sizes = [1, 256], strides = [1, 1]} : vector<2x256xf32> to vector<1x256xf32>
    %6 = vector.extract_strided_slice %4 {offsets = [1, 0], sizes = [1, 256], strides = [1, 1]} : vector<2x256xf32> to vector<1x256xf32>
    %7 = math.floor %5 : vector<1x256xf32>
    %8 = math.floor %6 : vector<1x256xf32>
    %9 = arith.subf %5, %7 : vector<1x256xf32>
    %cst = arith.constant 1.000000e+00 : f32
    %10 = vector.broadcast %cst : f32 to vector<1x256xf32>
    %11 = arith.subf %10, %9 : vector<1x256xf32>
    %12 = arith.subf %6, %8 : vector<1x256xf32>
    %cst_3 = arith.constant 1.000000e+00 : f32
    %13 = vector.broadcast %cst_3 : f32 to vector<1x256xf32>
    %14 = arith.subf %13, %12 : vector<1x256xf32>
    %c256_i32 = arith.constant 256 : i32
    %15 = arith.muli %arg2, %c256_i32 : i32
    %16 = arith.fptosi %8 : vector<1x256xf32> to vector<1x256xi32>
    %c16_i32 = arith.constant 16 : i32
    %17 = vector.broadcast %c16_i32 : i32 to vector<1x256xi32>
    %18 = arith.muli %16, %17 : vector<1x256xi32>
    %19 = arith.fptosi %7 : vector<1x256xf32> to vector<1x256xi32>
    %20 = arith.addi %18, %19 : vector<1x256xi32>
    %21 = vector.broadcast %15 : i32 to vector<1x256xi32>
    %22 = arith.subi %20, %21 : vector<1x256xi32>
    %c1_i32 = arith.constant 1 : i32
    %23 = vector.broadcast %c1_i32 : i32 to vector<1x256xi32>
    %24 = arith.addi %22, %23 : vector<1x256xi32>
    %c16_i32_4 = arith.constant 16 : i32
    %25 = vector.broadcast %c16_i32_4 : i32 to vector<1x256xi32>
    %26 = arith.addi %22, %25 : vector<1x256xi32>
    %c1_i32_5 = arith.constant 1 : i32
    %27 = vector.broadcast %c1_i32_5 : i32 to vector<1x256xi32>
    %28 = arith.addi %26, %27 : vector<1x256xi32>
    %29 = arith.mulf %14, %11 : vector<1x256xf32>
    %30 = arith.mulf %14, %9 : vector<1x256xf32>
    %31 = arith.mulf %12, %11 : vector<1x256xf32>
    %32 = arith.mulf %12, %9 : vector<1x256xf32>
    %33 = tpu.iota {dimensions = array<i32: 0>} : vector<256x256xi32>
    %34 = vector.broadcast %28 : vector<1x256xi32> to vector<256x256xi32>
    %35 = arith.cmpi eq, %33, %34 : vector<256x256xi32>
    %36 = vector.broadcast %26 : vector<1x256xi32> to vector<256x256xi32>
    %37 = arith.cmpi eq, %33, %36 : vector<256x256xi32>
    %38 = vector.broadcast %24 : vector<1x256xi32> to vector<256x256xi32>
    %39 = arith.cmpi eq, %33, %38 : vector<256x256xi32>
    %40 = vector.broadcast %22 : vector<1x256xi32> to vector<256x256xi32>
    %41 = arith.cmpi eq, %33, %40 : vector<256x256xi32>
    %cst_6 = arith.constant 0.000000e+00 : f32
    %42 = vector.shape_cast %29 : vector<1x256xf32> to vector<1x256xf32>
    %43 = vector.broadcast %42 : vector<1x256xf32> to vector<256x256xf32>
    %44 = vector.broadcast %cst_6 : f32 to vector<256x256xf32>
    %45 = arith.select %41, %43, %44 : vector<256x256xi1>, vector<256x256xf32>
    %46 = vector.shape_cast %30 : vector<1x256xf32> to vector<1x256xf32>
    %47 = vector.broadcast %46 : vector<1x256xf32> to vector<256x256xf32>
    %48 = arith.select %39, %47, %45 : vector<256x256xi1>, vector<256x256xf32>
    %49 = vector.shape_cast %31 : vector<1x256xf32> to vector<1x256xf32>
    %50 = vector.broadcast %49 : vector<1x256xf32> to vector<256x256xf32>
    %51 = arith.select %37, %50, %48 : vector<256x256xi1>, vector<256x256xf32>
    %52 = vector.shape_cast %32 : vector<1x256xf32> to vector<1x256xf32>
    %53 = vector.broadcast %52 : vector<1x256xf32> to vector<256x256xf32>
    %54 = arith.select %35, %53, %51 : vector<256x256xi1>, vector<256x256xf32>
    %c0_7 = arith.constant 0 : index
    %c0_8 = arith.constant 0 : index
    %55 = vector.load %arg7[%c0_7, %c0_8] : memref<4x256xf32, #tpu.memory_space<vmem>>, vector<4x256xf32>
    %c0_9 = arith.constant 0 : index
    %c0_10 = arith.constant 0 : index
    %c0_11 = arith.constant 0 : index
    %56 = vector.load %arg3[%c0_9, %c0_10, %c0_11] : memref<1x4x256xf32, #tpu.memory_space<vmem>>, vector<1x4x256xf32>
    %57 = vector.shape_cast %56 : vector<1x4x256xf32> to vector<4x256xf32>
    %cst_12 = arith.constant dense<0.000000e+00> : vector<4x256xf32>
    %58 = tpu.matmul %57, %54, %cst_12 {dimension_numbers = #tpu.dot_dimension_numbers<[1], [0], [0], [1], [0, 0, 1, 1], [], []>, precision = #tpu.contract_precision<fp32>} : vector<4x256xf32>, vector<256x256xf32>, vector<4x256xf32> -> vector<4x256xf32>
    %59 = arith.addf %55, %58 : vector<4x256xf32>
    %c0_13 = arith.constant 0 : index
    %c0_14 = arith.constant 0 : index
    %60 = vector.load %arg7[%c0_13, %c0_14] : memref<4x256xf32, #tpu.memory_space<vmem>>, vector<4x256xf32>
    tpu.vector_store %arg7[%c0_13, %c0_14], %59 {strides = array<i32>} : memref<4x256xf32, #tpu.memory_space<vmem>>, vector<4x256xf32>,
    %c0_i32_15 = arith.constant 0 : i32
    %61 = arith.cmpi eq, %arg2, %c0_i32_15 : i32
    %62 = arith.extui %61 : i1 to i32
    %c0_i32_16 = arith.constant 0 : i32
    %63 = arith.cmpi ne, %62, %c0_i32_16 : i32
    scf.if %63 {
      %cst_17 = arith.constant 0.000000e+00 : f32
      %64 = vector.broadcast %cst_17 : f32 to vector<1x256xf32>
      %65 = arith.cmpf ogt, %5, %64 : vector<1x256xf32>
      %cst_18 = arith.constant 1.500000e+01 : f32
      %66 = vector.broadcast %cst_18 : f32 to vector<1x256xf32>
      %67 = arith.cmpf olt, %5, %66 : vector<1x256xf32>
      %68 = arith.andi %65, %67 : vector<1x256xi1>
      %cst_19 = arith.constant 0.000000e+00 : f32
      %69 = vector.broadcast %cst_19 : f32 to vector<1x256xf32>
      %70 = arith.cmpf ogt, %6, %69 : vector<1x256xf32>
      %71 = arith.andi %68, %70 : vector<1x256xi1>
      %cst_20 = arith.constant 1.500000e+01 : f32
      %72 = vector.broadcast %cst_20 : f32 to vector<1x256xf32>
      %73 = arith.cmpf olt, %6, %72 : vector<1x256xf32>
      %74 = arith.andi %71, %73 : vector<1x256xi1>
      %75 = arith.extui %74 : vector<1x256xi1> to vector<1x256xi32>
      %76 = arith.sitofp %75 : vector<1x256xi32> to vector<1x256xf32>
      %c0_21 = arith.constant 0 : index
      %c0_22 = arith.constant 0 : index
      %77 = vector.load %arg7[%c0_21, %c0_22] : memref<4x256xf32, #tpu.memory_space<vmem>>, vector<4x256xf32>
      %78 = vector.broadcast %76 : vector<1x256xf32> to vector<4x256xf32>
      %79 = arith.mulf %77, %78 : vector<4x256xf32>
      %c0_23 = arith.constant 0 : index
      %c0_24 = arith.constant 0 : index
      %c0_25 = arith.constant 0 : index
      %80 = vector.load %arg5[%c0_23, %c0_24, %c0_25] : memref<1x4x256xf32, #tpu.memory_space<vmem>>, vector<1x4x256xf32>
      %81 = vector.shape_cast %80 : vector<1x4x256xf32> to vector<4x256xf32>
      %82 = vector.shape_cast %79 : vector<4x256xf32> to vector<1x4x256xf32>
      tpu.vector_store %arg5[%c0_23, %c0_24, %c0_25], %82 {strides = array<i32>} : memref<1x4x256xf32, #tpu.memory_space<vmem>>, vector<1x4x256xf32>,
      %c0_26 = arith.constant 0 : index
      %c0_27 = arith.constant 0 : index
      %c0_28 = arith.constant 0 : index
      %83 = vector.load %arg6[%c0_26, %c0_27, %c0_28] : memref<1x1x256xf32, #tpu.memory_space<vmem>>, vector<1x1x256xf32>
      %84 = vector.shape_cast %83 : vector<1x1x256xf32> to vector<1x256xf32>
      %85 = vector.shape_cast %76 : vector<1x256xf32> to vector<1x1x256xf32>
      tpu.vector_store %arg6[%c0_26, %c0_27, %c0_28], %85 {strides = array<i32>} : memref<1x1x256xf32, #tpu.memory_space<vmem>>, vector<1x1x256xf32>,
    } else {
    }
    return
  }
  func.func @transform_0(%arg0: i32, %arg1: i32, %arg2: i32) -> (i32, i32, i32) {
    %c0_i32 = arith.constant 0 : i32
    %c0_i32_0 = arith.constant 0 : i32
    return %arg0, %c0_i32, %arg2 : i32, i32, i32
  }
  func.func @transform_1(%arg0: i32, %arg1: i32, %arg2: i32) -> (i32, i32, i32) {
    %c0_i32 = arith.constant 0 : i32
    %c0_i32_0 = arith.constant 0 : i32
    return %arg0, %c0_i32, %arg1 : i32, i32, i32
  }
  func.func @transform_2(%arg0: i32, %arg1: i32, %arg2: i32) -> (i32, i32, i32) {
    %c0_i32 = arith.constant 0 : i32
    %c0_i32_0 = arith.constant 0 : i32
    return %arg0, %c0_i32, %arg1 : i32, i32, i32
  }
  func.func @transform_3(%arg0: i32, %arg1: i32, %arg2: i32) -> (i32, i32, i32) {
    %c0_i32 = arith.constant 0 : i32
    %c0_i32_0 = arith.constant 0 : i32
    return %arg0, %c0_i32, %arg1 : i32, i32, i32
  }
}

</mosaic_0001>

<llo_original>
// kernel: tpu_custom_call.1
$region0: #{tpu_custom_call.1}
  #allocation0 [shape = 'u32[]', space=smem, size = 0x4, offset = 0x4, fixed_abs, tag = 'smem constant byte address 0x4 - core index']
  #allocation1 [shape = 'u32[144,128]{1,0:T(1,128)}', space=vmem, size = 0x12000, scoped, tag = 'internal scratch']
  #allocation2 [shape = 'f32[4,256]{1,0:T(4,128)}', space=vmem, size = 0x1000, scoped, tag = 'scratch operand']
  %s0 = inlined_call_operand.hbm [shape: f32[2,4,256], index: 0, kind: input, shape index: {}]
  %s1 = inlined_call_operand.hbm [shape: f32[2,2,256], index: 1, kind: input, shape index: {}]
  %s2 = inlined_call_operand.hbm [shape: f32[2,4,256], index: 2, kind: output, shape index: {0}]
  %s3 = inlined_call_operand.hbm [shape: f32[2,1,256], index: 3, kind: output, shape index: {1}]
  %4 = xla_tuple %s2, %s3
  %s5 = sld [smem:[#allocation0]]
  $region65: #{tpu_custom_call.1} parent=0
    _
  %s7 = ssub.s32 1, %s5
  %s8 = scalar_select 0, %s7, %s5
  $region1: #{tpu_custom_call.1} parent=0
    #allocation3 [shape = 'u8[8192]{0}', space=vmem, size = 0x2000, scoped, tag = 'input window, operand 0']
    #allocation4 [shape = 's32[2]{0}', space=sflag, size = 0x8, scoped, tag = 'scoped memory for tpu_custom_call.1']
    #allocation5 [shape = 's32[2]{0}', space=sflag, size = 0x8, scoped, tag = 'scoped memory for tpu_custom_call.1']
    #allocation6 [shape = 'u8[4096]{0}', space=vmem, size = 0x1000, scoped, tag = 'input window, operand 1']
    #allocation7 [shape = 's32[2]{0}', space=sflag, size = 0x8, scoped, tag = 'scoped memory for tpu_custom_call.1']
    #allocation8 [shape = 'u8[8192]{0}', space=vmem, size = 0x2000, scoped, tag = 'output window, operand 0']
    #allocation9 [shape = 'u8[2048]{0}', space=vmem, size = 0x800, scoped, tag = 'output window, operand 1']
    #allocation10 [shape = 's32[2]{0}', space=sflag, size = 0x8, scoped, tag = 'scoped memory for tpu_custom_call.1']
    %9 = vsyncpa [#allocation4], 0
    %s10 = scalar_lea.sflag [#allocation4], 1
    %11 = vsyncpa %s10, 0
    %12 = vsyncpa [#allocation7], 0
    %s13 = scalar_lea.sflag [#allocation7], 1
    %14 = vsyncpa %s13, 0
    %15 = vsyncpa [#allocation5], 0
    %s16 = scalar_lea.sflag [#allocation5], 1
    %17 = vsyncpa %s16, 0
    %18 = vsyncpa [#allocation10], 0
    %s19 = scalar_lea.sflag [#allocation10], 1
    %20 = vsyncpa %s19, 0
    loop: start=0, step=1, limit=4
    $region2: #{tpu_custom_call.1} parent=1 // loop_pre_header
      _
    $region3: #{tpu_custom_call.1} parent=1 // loop_header
      %s22 = sphi 0, %s26
      %p23 = scmp.ge.s32.totalorder %s22, 4
      %s29 = sphi 0, %s48
      %s30 = sphi 0, %s44
      %s31 = sphi 0, %s40
      %s32 = sphi 0, %s29
      %s33 = sphi 0, %s30
      %s34 = sphi 0, %s31
      %s35 = sphi 0, %s32
      %s36 = sphi 0, %s33
      %s37 = sphi 0, %s34
      %s53 = sphi 0, %s55
      %s56 = sphi 0, %s53
      %s57 = sphi 0, %s56
      %s73 = sphi 0, %s57
      %s81 = sphi 0, %s83
      %s84 = sphi 0, %s81
      %s85 = sphi 0, %s84
      %s101 = sphi 0, %s85
      %s109 = sphi 0, %s111
      %s112 = sphi 0, %s109
      %s113 = sphi 0, %s112
      %s129 = sphi 0, %s113
      %s137 = sphi 0, %s139
      %s140 = sphi 0, %s137
      %s141 = sphi 0, %s140
      %s157 = sphi 0, %s141
    $region4: #{tpu_custom_call.1} parent=1 // loop_header_branch
      %25 = sbr.rel (%p23) target = $region8
    $region5: #{tpu_custom_call.1} parent=1 // loop_body
      %s27 = ssub.s32 %s22, 1
      %s28 = ssub.s32 %s22, 2
      %s38 = sadd.s32 1, %s31
      %p39 = scmp.ge.s32.totalorder %s38, 1
      %s40 = scalar_select %p39, 0, %s38
      %s41 = sadd.s32 1, %s30
      %s42 = scalar_select %p39, %s41, %s30
      %p43 = scmp.ge.s32.totalorder %s42, 1
      %s44 = scalar_select %p43, 0, %s42
      %s45 = sadd.s32 1, %s29
      %s46 = scalar_select %p43, %s45, %s29
      %p47 = scmp.ge.s32.totalorder %s46, 2
      %s48 = scalar_select %p47, 0, %s46
      %s49 = ssub.s32 %s29, %s48
      %s50 = ssub.s32 %s31, %s40
      %s51 = sor.u32 %s49, %s50
      %p52 = scmp.eq.s32.totalorder %s51, 0
      %s54 = sadd.s32 %s53, 1
      %s55 = scalar_select %p52, %s53, %s54
      %p58 = pneg %p52
      %p59 = scmp.eq.s32.totalorder %s22, 1
      %p60 = por %p58, %p59
      %p61 = scmp.ne.s32.totalorder %s53, %s56
      %p62 = scmp.eq.s32.totalorder %s22, 0
      %p63 = por %p61, %p62
      %p64 = scmp.ne.s32.totalorder %s53, %s56
      %p65 = scmp.eq.s32.totalorder %s27, 1
      %p66 = por %p64, %p65
      %p67 = scmp.ne.s32.totalorder %s56, %s57
      %p68 = scmp.eq.s32.totalorder %s27, 0
      %p69 = por %p67, %p68
      %p70 = scmp.ne.s32.totalorder %s56, %s57
      %p71 = scmp.eq.s32.totalorder %s28, 1
      %p72 = por %p70, %p71
      %p74 = scmp.ne.s32.totalorder %s57, %s73
      %p75 = scmp.eq.s32.totalorder %s28, 0
      %p76 = por %p74, %p75
      %s77 = ssub.s32 %s29, %s48
      %s78 = ssub.s32 %s30, %s44
      %s79 = sor.u32 %s77, %s78
      %p80 = scmp.eq.s32.totalorder %s79, 0
      %s82 = sadd.s32 %s81, 1
      %s83 = scalar_select %p80, %s81, %s82
      %p86 = pneg %p80
      %p87 = scmp.eq.s32.totalorder %s22, 1
      %p88 = por %p86, %p87
      %p89 = scmp.ne.s32.totalorder %s81, %s84
      %p90 = scmp.eq.s32.totalorder %s22, 0
      %p91 = por %p89, %p90
      %p92 = scmp.ne.s32.totalorder %s81, %s84
      %p93 = scmp.eq.s32.totalorder %s27, 1
      %p94 = por %p92, %p93
      %p95 = scmp.ne.s32.totalorder %s84, %s85
      %p96 = scmp.eq.s32.totalorder %s27, 0
      %p97 = por %p95, %p96
      %p98 = scmp.ne.s32.totalorder %s84, %s85
      %p99 = scmp.eq.s32.totalorder %s28, 1
      %p100 = por %p98, %p99
      %p102 = scmp.ne.s32.totalorder %s85, %s101
      %p103 = scmp.eq.s32.totalorder %s28, 0
      %p104 = por %p102, %p103
      %s105 = ssub.s32 %s29, %s48
      %s106 = ssub.s32 %s30, %s44
      %s107 = sor.u32 %s105, %s106
      %p108 = scmp.eq.s32.totalorder %s107, 0
      %s110 = sadd.s32 %s109, 1
      %s111 = scalar_select %p108, %s109, %s110
      %p114 = pneg %p108
      %p115 = scmp.eq.s32.totalorder %s22, 1
      %p116 = por %p114, %p115
      %p117 = scmp.ne.s32.totalorder %s109, %s112
      %p118 = scmp.eq.s32.totalorder %s22, 0
      %p119 = por %p117, %p118
      %p120 = scmp.ne.s32.totalorder %s109, %s112
      %p121 = scmp.eq.s32.totalorder %s27, 1
      %p122 = por %p120, %p121
      %p123 = scmp.ne.s32.totalorder %s112, %s113
      %p124 = scmp.eq.s32.totalorder %s27, 0
      %p125 = por %p123, %p124
      %p126 = scmp.ne.s32.totalorder %s112, %s113
      %p127 = scmp.eq.s32.totalorder %s28, 1
      %p128 = por %p126, %p127
      %p130 = scmp.ne.s32.totalorder %s113, %s129
      %p131 = scmp.eq.s32.totalorder %s28, 0
      %p132 = por %p130, %p131
      %s133 = ssub.s32 %s29, %s48
      %s134 = ssub.s32 %s30, %s44
      %s135 = sor.u32 %s133, %s134
      %p136 = scmp.eq.s32.totalorder %s135, 0
      %s138 = sadd.s32 %s137, 1
      %s139 = scalar_select %p136, %s137, %s138
      %p142 = pneg %p136
      %p143 = scmp.eq.s32.totalorder %s22, 1
      %p144 = por %p142, %p143
      %p145 = scmp.ne.s32.totalorder %s137, %s140
      %p146 = scmp.eq.s32.totalorder %s22, 0
      %p147 = por %p145, %p146
      %p148 = scmp.ne.s32.totalorder %s137, %s140
      %p149 = scmp.eq.s32.totalorder %s27, 1
      %p150 = por %p148, %p149
      %p151 = scmp.ne.s32.totalorder %s140, %s141
      %p152 = scmp.eq.s32.totalorder %s27, 0
      %p153 = por %p151, %p152
      %p154 = scmp.ne.s32.totalorder %s140, %s141
      %p155 = scmp.eq.s32.totalorder %s28, 1
      %p156 = por %p154, %p155
      %p158 = scmp.ne.s32.totalorder %s141, %s157
      %p159 = scmp.eq.s32.totalorder %s28, 0
      %p160 = por %p158, %p159
      %p161 = scmp.le.s32.totalorder 1, %s22
      %p162 = scmp.lt.s32.totalorder %s22, 3
      %p163 = pnand %p161, %p162
      %p164 = pneg %p163
      // Predicated region
      $region9: #{tpu_custom_call.1} parent=5 // pred_check
        _
      $region10: #{tpu_custom_call.1} parent=5 // pred_check_branch
        %166 = sbr.rel (%p163) target = $region12
      $region11: #{tpu_custom_call.1} parent=5 // pred_region
        %s167 = ssub.s32 %s22, 1
      $region12: #{tpu_custom_call.1} parent=5 // pred_fallthru
        _
      %p168 = scmp.lt.s32.totalorder %s22, 2
      // Predicated region
      $region13: #{tpu_custom_call.1} parent=5 // pred_check
        %p169 = pneg %p168
      $region14: #{tpu_custom_call.1} parent=5 // pred_check_branch
        %171 = sbr.rel (%p169) target = $region16
      $region15: #{tpu_custom_call.1} parent=5 // pred_region
        // Predicated region
        $region17: #{tpu_custom_call.1} parent=15 // pred_check
          %p172 = pneg %p63
        $region18: #{tpu_custom_call.1} parent=15 // pred_check_branch
          %174 = sbr.rel (%p172) target = $region20
        $region19: #{tpu_custom_call.1} parent=15 // pred_region
          %s175 = sand.u32 %s53, 1
          %s176 = scalar_lea.sflag [#allocation4], %s175
          %s177 = sand.u32 %s53, 1
          %s178 = smul.addr %s177, 8
          %s179 = scalar_lea.vmem [#allocation3], %s178
          %s180 = smul.u32 2, %s31
          %s182 = ssub.s32 128, 128
          %183 = vsyncadd %s176, %s182
          %s184 = smul.addr %s29, 2
          %s185 = sadd.s32 %s180, %s184
          %s186 = smul.addr %s185, 64
          %s187 = scalar_lea.hbm %s0, %s186
          %s189 = sshll.u32 %s179, 4
          %s190 = int_to_ptr.vmem [resolvable:$true] %s189
          %192 = dma.hbm_to_vmem [thread:$0]  %s187, 128, %s190, %s176
        $region20: #{tpu_custom_call.1} parent=15 // pred_fallthru
          _
        // Predicated region
        $region21: #{tpu_custom_call.1} parent=15 // pred_check
          %p193 = pneg %p91
        $region22: #{tpu_custom_call.1} parent=15 // pred_check_branch
          %195 = sbr.rel (%p193) target = $region24
        $region23: #{tpu_custom_call.1} parent=15 // pred_region
          %s196 = sand.u32 %s81, 1
          %s197 = scalar_lea.sflag [#allocation7], %s196
          %s198 = sand.u32 %s81, 1
          %s199 = smul.addr %s198, 4
          %s200 = scalar_lea.vmem [#allocation6], %s199
          %s201 = smul.u32 2, %s30
          %s203 = ssub.s32 64, 64
          %204 = vsyncadd %s197, %s203
          %s205 = smul.addr %s29, 2
          %s206 = sadd.s32 %s201, %s205
          %s207 = smul.addr %s206, 32
          %s208 = scalar_lea.hbm %s1, %s207
          %s210 = sshll.u32 %s200, 4
          %s211 = int_to_ptr.vmem [resolvable:$true] %s210
          %213 = dma.hbm_to_vmem [thread:$0]  %s208, 64, %s211, %s197
        $region24: #{tpu_custom_call.1} parent=15 // pred_fallthru
          _
      $region16: #{tpu_custom_call.1} parent=5 // pred_fallthru
        _
      %p214 = scmp.le.s32.totalorder 1, %s22
      %p215 = scmp.lt.s32.totalorder %s22, 3
      %p216 = pnand %p214, %p215
      %p217 = pneg %p216
      // Predicated region
      $region25: #{tpu_custom_call.1} parent=5 // pred_check
        _
      $region26: #{tpu_custom_call.1} parent=5 // pred_check_branch
        %219 = sbr.rel (%p216) target = $region28
      $region27: #{tpu_custom_call.1} parent=5 // pred_region
        %s220 = ssub.s32 %s22, 1
        %s221 = sand.u32 %s56, 1
        %s222 = scalar_lea.sflag [#allocation4], %s221
        %s223 = sand.u32 %s56, 1
        %s224 = smul.addr %s223, 8
        %s225 = scalar_lea.vmem [#allocation3], %s224
        // Predicated region
        $region29: #{tpu_custom_call.1} parent=27 // pred_check
          %p226 = pneg %p69
        $region30: #{tpu_custom_call.1} parent=27 // pred_check_branch
          %228 = sbr.rel (%p226) target = $region32
        $region31: #{tpu_custom_call.1} parent=27 // pred_region
          %229 = dma.done %s222, 128
        $region32: #{tpu_custom_call.1} parent=27 // pred_fallthru
          _
        %s230 = sand.u32 %s84, 1
        %s231 = scalar_lea.sflag [#allocation7], %s230
        %s232 = sand.u32 %s84, 1
        %s233 = smul.addr %s232, 4
        %s234 = scalar_lea.vmem [#allocation6], %s233
        // Predicated region
        $region33: #{tpu_custom_call.1} parent=27 // pred_check
          %p235 = pneg %p97
        $region34: #{tpu_custom_call.1} parent=27 // pred_check_branch
          %237 = sbr.rel (%p235) target = $region36
        $region35: #{tpu_custom_call.1} parent=27 // pred_region
          %238 = dma.done %s231, 64
        $region36: #{tpu_custom_call.1} parent=27 // pred_fallthru
          _
        %s239 = sand.u32 %s56, 1
        %s240 = scalar_lea.sflag [#allocation4], %s239
        %s241 = sand.u32 %s56, 1
        %s242 = smul.addr %s241, 8
        %s243 = scalar_lea.vmem [#allocation3], %s242
        %p244 = pneg %p69
        %p245 = pneg %p66
        %s246 = sand.u32 %s84, 1
        %s247 = scalar_lea.sflag [#allocation7], %s246
        %s248 = sand.u32 %s84, 1
        %s249 = smul.addr %s248, 4
        %s250 = scalar_lea.vmem [#allocation6], %s249
        %p251 = pneg %p97
        %p252 = pneg %p94
        %p253 = pneg %p125
        %p254 = pneg %p122
        %s255 = sand.u32 %s112, 1
        %s256 = scalar_lea.sflag [#allocation5], %s255
        %s257 = sand.u32 %s112, 1
        %s258 = smul.addr %s257, 8
        %s259 = scalar_lea.vmem [#allocation8], %s258
        %p260 = pneg %p153
        %p261 = pneg %p150
        %s262 = sand.u32 %s140, 1
        %s263 = scalar_lea.sflag [#allocation10], %s262
        %s264 = sand.u32 %s140, 1
        %s265 = smul.addr %s264, 2
        %s266 = scalar_lea.vmem [#allocation9], %s265
        %s267 = smul.u32 2, %s34
        %s268 = smul.u32 2, %s33
        %s269 = smul.u32 2, %s33
        %s270 = smul.u32 2, %s33
        %p271 = scmp.eq.s32.totalorder %s34, 0
        // Predicated region
        $region37: #{tpu_custom_call.1} parent=27 // pred_check
          %p272 = pneg %p271
        $region38: #{tpu_custom_call.1} parent=27 // pred_check_branch
          %274 = sbr.rel (%p272) target = $region40
        $region39: #{tpu_custom_call.1} parent=27 // pred_region
          %275 = vst [vmem:[#allocation2] sm:$0xff] 0.0
        $region40: #{tpu_custom_call.1} parent=27 // pred_fallthru
          _
        %v276 = vld [vmem:[%s234] sm:$0xf]
        %v277 = vfloor.f32 %v276
        %v278 = vsub.f32 %v276, %v277
        %v279 = vsub.f32 1.0, %v278
        %s280 = smul.u32 %s34, 256
        %v281 = vcvt.f32.s32.to.zero.pseudo %v277
        %v282 = vmul.u32 %v281, 16
        %v283 = vrot.slane %v281, 7
        %v284 = vadd.s32 %v282, %v283
        %v285 = vstv %s280
        %v286 = vsub.s32 %v284, %v285
        %v287 = vadd.s32 %v286, 1
        %v288 = vadd.s32 %v286, 16
        %v289 = vadd.s32 %v288, 1
        %v291 = vrot.slane %v279, 7
        %v293 = vmul.f32 %v279, %v291
        %v295 = vrot.slane %v278, 7
        %v297 = vmul.f32 %v279, %v295
        %v298 = vmul.f32 %v278, %v291
        %v299 = vmul.f32 %v278, %v295
        %v300 = vlaneseq
        %v301 = vshrl.u32 %v300, 7
        %v302 = vadd.s32 %v301, 8
        %v303 = vadd.s32 %v301, 16
        %v304 = vadd.s32 %v301, 24
        %v305 = vadd.s32 %v301, 32
        %v306 = vadd.s32 %v301, 40
        %v307 = vadd.s32 %v301, 48
        %v308 = vadd.s32 %v301, 56
        %v309 = vadd.s32 %v301, 64
        %v310 = vadd.s32 %v301, 72
        %v311 = vadd.s32 %v301, 80
        %v312 = vadd.s32 %v301, 88
        %v313 = vadd.s32 %v301, 96
        %v314 = vadd.s32 %v301, 104
        %v315 = vadd.s32 %v301, 112
        %v316 = vadd.s32 %v301, 120
        %v317 = vadd.s32 %v301, 128
        %v318 = vadd.s32 %v301, 136
        %v319 = vadd.s32 %v301, 144
        %v320 = vadd.s32 %v301, 152
        %v321 = vadd.s32 %v301, 160
        %v322 = vadd.s32 %v301, 168
        %v323 = vadd.s32 %v301, 176
        %v324 = vadd.s32 %v301, 184
        %v325 = vadd.s32 %v301, 192
        %v326 = vadd.s32 %v301, 200
        %v327 = vadd.s32 %v301, 208
        %v328 = vadd.s32 %v301, 216
        %v329 = vadd.s32 %v301, 224
        %v330 = vadd.s32 %v301, 232
        %v331 = vadd.s32 %v301, 240
        %v332 = vadd.s32 %v301, 248
        %v333 = vlaneseq
        %v334 = vshrl.u32 %v333, 7
        %v335 = vsub.s32 1, %v334
        %v336 = vrot.slane %v289, %v335
        %v337 = vlaneseq
        %v338 = vshrl.u32 %v337, 7
        %v339 = vsub.s32 3, %v338
        %v340 = vrot.slane %v289, %v339
        %v341 = vlaneseq
        %v342 = vshrl.u32 %v341, 7
        %v343 = vsub.s32 1, %v342
        %v344 = vrot.slane %v336, %v343
        %v345 = vlaneseq
        %v346 = vshrl.u32 %v345, 7
        %v347 = vsub.s32 1, %v346
        %v348 = vrot.slane %v340, %v347
        %vm349 = vcmp.eq.s32.totalorder %v301, %v344
        %vm350 = vcmp.eq.s32.totalorder %v301, %v348
        %vm351 = vcmp.eq.s32.totalorder %v302, %v344
        %vm352 = vcmp.eq.s32.totalorder %v302, %v348
        %vm353 = vcmp.eq.s32.totalorder %v303, %v344
        %vm354 = vcmp.eq.s32.totalorder %v303, %v348
        %vm355 = vcmp.eq.s32.totalorder %v304, %v344
        %vm356 = vcmp.eq.s32.totalorder %v304, %v348
        %vm357 = vcmp.eq.s32.totalorder %v305, %v344
        %vm358 = vcmp.eq.s32.totalorder %v305, %v348
        %vm359 = vcmp.eq.s32.totalorder %v306, %v344
        %vm360 = vcmp.eq.s32.totalorder %v306, %v348
        %vm361 = vcmp.eq.s32.totalorder %v307, %v344
        %vm362 = vcmp.eq.s32.totalorder %v307, %v348
        %vm363 = vcmp.eq.s32.totalorder %v308, %v344
        %vm364 = vcmp.eq.s32.totalorder %v308, %v348
        %vm365 = vcmp.eq.s32.totalorder %v309, %v344
        %vm366 = vcmp.eq.s32.totalorder %v309, %v348
        %vm367 = vcmp.eq.s32.totalorder %v310, %v344
        %vm368 = vcmp.eq.s32.totalorder %v310, %v348
        %vm369 = vcmp.eq.s32.totalorder %v311, %v344
        %vm370 = vcmp.eq.s32.totalorder %v311, %v348
        %vm371 = vcmp.eq.s32.totalorder %v312, %v344
        %vm372 = vcmp.eq.s32.totalorder %v312, %v348
        %vm373 = vcmp.eq.s32.totalorder %v313, %v344
        %vm374 = vcmp.eq.s32.totalorder %v313, %v348
        %vm375 = vcmp.eq.s32.totalorder %v314, %v344
        %vm376 = vcmp.eq.s32.totalorder %v314, %v348
        %vm377 = vcmp.eq.s32.totalorder %v315, %v344
        %vm378 = vcmp.eq.s32.totalorder %v315, %v348
        %vm379 = vcmp.eq.s32.totalorder %v316, %v344
        %vm380 = vcmp.eq.s32.totalorder %v316, %v348
        %vm381 = vcmp.eq.s32.totalorder %v317, %v344
        %vm382 = vcmp.eq.s32.totalorder %v317, %v348
        %vm383 = vcmp.eq.s32.totalorder %v318, %v344
        %vm384 = vcmp.eq.s32.totalorder %v318, %v348
        %vm385 = vcmp.eq.s32.totalorder %v319, %v344
        %vm386 = vcmp.eq.s32.totalorder %v319, %v348
        %vm387 = vcmp.eq.s32.totalorder %v320, %v344
        %vm388 = vcmp.eq.s32.totalorder %v320, %v348
        %vm389 = vcmp.eq.s32.totalorder %v321, %v344
        %vm390 = vcmp.eq.s32.totalorder %v321, %v348
        %vm391 = vcmp.eq.s32.totalorder %v322, %v344
        %vm392 = vcmp.eq.s32.totalorder %v322, %v348
        %vm393 = vcmp.eq.s32.totalorder %v323, %v344
        %vm394 = vcmp.eq.s32.totalorder %v323, %v348
        %vm395 = vcmp.eq.s32.totalorder %v324, %v344
        %vm396 = vcmp.eq.s32.totalorder %v324, %v348
        %vm397 = vcmp.eq.s32.totalorder %v325, %v344
        %vm398 = vcmp.eq.s32.totalorder %v325, %v348
        %vm399 = vcmp.eq.s32.totalorder %v326, %v344
        %vm400 = vcmp.eq.s32.totalorder %v326, %v348
        %vm401 = vcmp.eq.s32.totalorder %v327, %v344
        %vm402 = vcmp.eq.s32.totalorder %v327, %v348
        %vm403 = vcmp.eq.s32.totalorder %v328, %v344
        %vm404 = vcmp.eq.s32.totalorder %v328, %v348
        %vm405 = vcmp.eq.s32.totalorder %v329, %v344
        %vm406 = vcmp.eq.s32.totalorder %v329, %v348
        %vm407 = vcmp.eq.s32.totalorder %v330, %v344
        %vm408 = vcmp.eq.s32.totalorder %v330, %v348
        %vm409 = vcmp.eq.s32.totalorder %v331, %v344
        %vm410 = vcmp.eq.s32.totalorder %v331, %v348
        %vm411 = vcmp.eq.s32.totalorder %v332, %v344
        %vm412 = vcmp.eq.s32.totalorder %v332, %v348
        %v413 = vlaneseq
        %v414 = vshrl.u32 %v413, 7
        %v415 = vsub.s32 1, %v414
        %v416 = vrot.slane %v288, %v415
        %v417 = vlaneseq
        %v418 = vshrl.u32 %v417, 7
        %v419 = vsub.s32 3, %v418
        %v420 = vrot.slane %v288, %v419
        %v421 = vlaneseq
        %v422 = vshrl.u32 %v421, 7
        %v423 = vsub.s32 1, %v422
        %v424 = vrot.slane %v416, %v423
        %v425 = vlaneseq
        %v426 = vshrl.u32 %v425, 7
        %v427 = vsub.s32 1, %v426
        %v428 = vrot.slane %v420, %v427
        %vm429 = vcmp.eq.s32.totalorder %v301, %v424
        %vm430 = vcmp.eq.s32.totalorder %v301, %v428
        %vm431 = vcmp.eq.s32.totalorder %v302, %v424
        %vm432 = vcmp.eq.s32.totalorder %v302, %v428
        %vm433 = vcmp.eq.s32.totalorder %v303, %v424
        %vm434 = vcmp.eq.s32.totalorder %v303, %v428
        %vm435 = vcmp.eq.s32.totalorder %v304, %v424
        %vm436 = vcmp.eq.s32.totalorder %v304, %v428
        %vm437 = vcmp.eq.s32.totalorder %v305, %v424
        %vm438 = vcmp.eq.s32.totalorder %v305, %v428
        %vm439 = vcmp.eq.s32.totalorder %v306, %v424
        %vm440 = vcmp.eq.s32.totalorder %v306, %v428
        %vm441 = vcmp.eq.s32.totalorder %v307, %v424
        %vm442 = vcmp.eq.s32.totalorder %v307, %v428
        %vm443 = vcmp.eq.s32.totalorder %v308, %v424
        %vm444 = vcmp.eq.s32.totalorder %v308, %v428
        %vm445 = vcmp.eq.s32.totalorder %v309, %v424
        %vm446 = vcmp.eq.s32.totalorder %v309, %v428
        %vm447 = vcmp.eq.s32.totalorder %v310, %v424
        %vm448 = vcmp.eq.s32.totalorder %v310, %v428
        %vm449 = vcmp.eq.s32.totalorder %v311, %v424
        %vm450 = vcmp.eq.s32.totalorder %v311, %v428
        %vm451 = vcmp.eq.s32.totalorder %v312, %v424
        %vm452 = vcmp.eq.s32.totalorder %v312, %v428
        %vm453 = vcmp.eq.s32.totalorder %v313, %v424
        %vm454 = vcmp.eq.s32.totalorder %v313, %v428
        %vm455 = vcmp.eq.s32.totalorder %v314, %v424
        %vm456 = vcmp.eq.s32.totalorder %v314, %v428
        %vm457 = vcmp.eq.s32.totalorder %v315, %v424
        %vm458 = vcmp.eq.s32.totalorder %v315, %v428
        %vm459 = vcmp.eq.s32.totalorder %v316, %v424
        %vm460 = vcmp.eq.s32.totalorder %v316, %v428
        %vm461 = vcmp.eq.s32.totalorder %v317, %v424
        %vm462 = vcmp.eq.s32.totalorder %v317, %v428
        %vm463 = vcmp.eq.s32.totalorder %v318, %v424
        %vm464 = vcmp.eq.s32.totalorder %v318, %v428
        %vm465 = vcmp.eq.s32.totalorder %v319, %v424
        %vm466 = vcmp.eq.s32.totalorder %v319, %v428
        %vm467 = vcmp.eq.s32.totalorder %v320, %v424
        %vm468 = vcmp.eq.s32.totalorder %v320, %v428
        %vm469 = vcmp.eq.s32.totalorder %v321, %v424
        %vm470 = vcmp.eq.s32.totalorder %v321, %v428
        %vm471 = vcmp.eq.s32.totalorder %v322, %v424
        %vm472 = vcmp.eq.s32.totalorder %v322, %v428
        %vm473 = vcmp.eq.s32.totalorder %v323, %v424
        %vm474 = vcmp.eq.s32.totalorder %v323, %v428
        %vm475 = vcmp.eq.s32.totalorder %v324, %v424
        %vm476 = vcmp.eq.s32.totalorder %v324, %v428
        %vm477 = vcmp.eq.s32.totalorder %v325, %v424
        %vm478 = vcmp.eq.s32.totalorder %v325, %v428
        %vm479 = vcmp.eq.s32.totalorder %v326, %v424
        %vm480 = vcmp.eq.s32.totalorder %v326, %v428
        %vm481 = vcmp.eq.s32.totalorder %v327, %v424
        %vm482 = vcmp.eq.s32.totalorder %v327, %v428
        %vm483 = vcmp.eq.s32.totalorder %v328, %v424
        %vm484 = vcmp.eq.s32.totalorder %v328, %v428
        %vm485 = vcmp.eq.s32.totalorder %v329, %v424
        %vm486 = vcmp.eq.s32.totalorder %v329, %v428
        %vm487 = vcmp.eq.s32.totalorder %v330, %v424
        %vm488 = vcmp.eq.s32.totalorder %v330, %v428
        %vm489 = vcmp.eq.s32.totalorder %v331, %v424
        %vm490 = vcmp.eq.s32.totalorder %v331, %v428
        %vm491 = vcmp.eq.s32.totalorder %v332, %v424
        %vm492 = vcmp.eq.s32.totalorder %v332, %v428
        %v493 = vlaneseq
        %v494 = vshrl.u32 %v493, 7
        %v495 = vsub.s32 1, %v494
        %v496 = vrot.slane %v287, %v495
        %v497 = vlaneseq
        %v498 = vshrl.u32 %v497, 7
        %v499 = vsub.s32 3, %v498
        %v500 = vrot.slane %v287, %v499
        %v501 = vlaneseq
        %v502 = vshrl.u32 %v501, 7
        %v503 = vsub.s32 1, %v502
        %v504 = vrot.slane %v496, %v503
        %v505 = vlaneseq
        %v506 = vshrl.u32 %v505, 7
        %v507 = vsub.s32 1, %v506
        %v508 = vrot.slane %v500, %v507
        %vm509 = vcmp.eq.s32.totalorder %v301, %v504
        %vm510 = vcmp.eq.s32.totalorder %v301, %v508
        %vm511 = vcmp.eq.s32.totalorder %v302, %v504
        %vm512 = vcmp.eq.s32.totalorder %v302, %v508
        %vm513 = vcmp.eq.s32.totalorder %v303, %v504
        %vm514 = vcmp.eq.s32.totalorder %v303, %v508
        %vm515 = vcmp.eq.s32.totalorder %v304, %v504
        %vm516 = vcmp.eq.s32.totalorder %v304, %v508
        %vm517 = vcmp.eq.s32.totalorder %v305, %v504
        %vm518 = vcmp.eq.s32.totalorder %v305, %v508
        %vm519 = vcmp.eq.s32.totalorder %v306, %v504
        %vm520 = vcmp.eq.s32.totalorder %v306, %v508
        %vm521 = vcmp.eq.s32.totalorder %v307, %v504
        %vm522 = vcmp.eq.s32.totalorder %v307, %v508
        %vm523 = vcmp.eq.s32.totalorder %v308, %v504
        %vm524 = vcmp.eq.s32.totalorder %v308, %v508
        %vm525 = vcmp.eq.s32.totalorder %v309, %v504
        %vm526 = vcmp.eq.s32.totalorder %v309, %v508
        %vm527 = vcmp.eq.s32.totalorder %v310, %v504
        %vm528 = vcmp.eq.s32.totalorder %v310, %v508
        %vm529 = vcmp.eq.s32.totalorder %v311, %v504
        %vm530 = vcmp.eq.s32.totalorder %v311, %v508
        %vm531 = vcmp.eq.s32.totalorder %v312, %v504
        %vm532 = vcmp.eq.s32.totalorder %v312, %v508
        %vm533 = vcmp.eq.s32.totalorder %v313, %v504
        %vm534 = vcmp.eq.s32.totalorder %v313, %v508
        %vm535 = vcmp.eq.s32.totalorder %v314, %v504
        %vm536 = vcmp.eq.s32.totalorder %v314, %v508
        %vm537 = vcmp.eq.s32.totalorder %v315, %v504
        %vm538 = vcmp.eq.s32.totalorder %v315, %v508
        %vm539 = vcmp.eq.s32.totalorder %v316, %v504
        %vm540 = vcmp.eq.s32.totalorder %v316, %v508
        %vm541 = vcmp.eq.s32.totalorder %v317, %v504
        %vm542 = vcmp.eq.s32.totalorder %v317, %v508
        %vm543 = vcmp.eq.s32.totalorder %v318, %v504
        %vm544 = vcmp.eq.s32.totalorder %v318, %v508
        %vm545 = vcmp.eq.s32.totalorder %v319, %v504
        %vm546 = vcmp.eq.s32.totalorder %v319, %v508
        %vm547 = vcmp.eq.s32.totalorder %v320, %v504
        %vm548 = vcmp.eq.s32.totalorder %v320, %v508
        %vm549 = vcmp.eq.s32.totalorder %v321, %v504
        %vm550 = vcmp.eq.s32.totalorder %v321, %v508
        %vm551 = vcmp.eq.s32.totalorder %v322, %v504
        %vm552 = vcmp.eq.s32.totalorder %v322, %v508
        %vm553 = vcmp.eq.s32.totalorder %v323, %v504
        %vm554 = vcmp.eq.s32.totalorder %v323, %v508
        %vm555 = vcmp.eq.s32.totalorder %v324, %v504
        %vm556 = vcmp.eq.s32.totalorder %v324, %v508
        %vm557 = vcmp.eq.s32.totalorder %v325, %v504
        %vm558 = vcmp.eq.s32.totalorder %v325, %v508
        %vm559 = vcmp.eq.s32.totalorder %v326, %v504
        %vm560 = vcmp.eq.s32.totalorder %v326, %v508
        %vm561 = vcmp.eq.s32.totalorder %v327, %v504
        %vm562 = vcmp.eq.s32.totalorder %v327, %v508
        %vm563 = vcmp.eq.s32.totalorder %v328, %v504
        %vm564 = vcmp.eq.s32.totalorder %v328, %v508
        %vm565 = vcmp.eq.s32.totalorder %v329, %v504
        %vm566 = vcmp.eq.s32.totalorder %v329, %v508
        %vm567 = vcmp.eq.s32.totalorder %v330, %v504
        %vm568 = vcmp.eq.s32.totalorder %v330, %v508
        %vm569 = vcmp.eq.s32.totalorder %v331, %v504
        %vm570 = vcmp.eq.s32.totalorder %v331, %v508
        %vm571 = vcmp.eq.s32.totalorder %v332, %v504
        %vm572 = vcmp.eq.s32.totalorder %v332, %v508
        %v573 = vlaneseq
        %v574 = vshrl.u32 %v573, 7
        %v575 = vsub.s32 1, %v574
        %v576 = vrot.slane %v286, %v575
        %v577 = vlaneseq
        %v578 = vshrl.u32 %v577, 7
        %v579 = vsub.s32 3, %v578
        %v580 = vrot.slane %v286, %v579
        %v581 = vlaneseq
        %v582 = vshrl.u32 %v581, 7
        %v583 = vsub.s32 1, %v582
        %v584 = vrot.slane %v576, %v583
        %v585 = vlaneseq
        %v586 = vshrl.u32 %v585, 7
        %v587 = vsub.s32 1, %v586
        %v588 = vrot.slane %v580, %v587
        %vm589 = vcmp.eq.s32.totalorder %v301, %v584
        %vm590 = vcmp.eq.s32.totalorder %v301, %v588
        %vm591 = vcmp.eq.s32.totalorder %v302, %v584
        %vm592 = vcmp.eq.s32.totalorder %v302, %v588
        %vm593 = vcmp.eq.s32.totalorder %v303, %v584
        %vm594 = vcmp.eq.s32.totalorder %v303, %v588
        %vm595 = vcmp.eq.s32.totalorder %v304, %v584
        %vm596 = vcmp.eq.s32.totalorder %v304, %v588
        %vm597 = vcmp.eq.s32.totalorder %v305, %v584
        %vm598 = vcmp.eq.s32.totalorder %v305, %v588
        %vm599 = vcmp.eq.s32.totalorder %v306, %v584
        %vm600 = vcmp.eq.s32.totalorder %v306, %v588
        %vm601 = vcmp.eq.s32.totalorder %v307, %v584
        %vm602 = vcmp.eq.s32.totalorder %v307, %v588
        %vm603 = vcmp.eq.s32.totalorder %v308, %v584
        %vm604 = vcmp.eq.s32.totalorder %v308, %v588
        %vm605 = vcmp.eq.s32.totalorder %v309, %v584
        %vm606 = vcmp.eq.s32.totalorder %v309, %v588
        %vm607 = vcmp.eq.s32.totalorder %v310, %v584
        %vm608 = vcmp.eq.s32.totalorder %v310, %v588
        %vm609 = vcmp.eq.s32.totalorder %v311, %v584
        %vm610 = vcmp.eq.s32.totalorder %v311, %v588
        %vm611 = vcmp.eq.s32.totalorder %v312, %v584
        %vm612 = vcmp.eq.s32.totalorder %v312, %v588
        %vm613 = vcmp.eq.s32.totalorder %v313, %v584
        %vm614 = vcmp.eq.s32.totalorder %v313, %v588
        %vm615 = vcmp.eq.s32.totalorder %v314, %v584
        %vm616 = vcmp.eq.s32.totalorder %v314, %v588
        %vm617 = vcmp.eq.s32.totalorder %v315, %v584
        %vm618 = vcmp.eq.s32.totalorder %v315, %v588
        %vm619 = vcmp.eq.s32.totalorder %v316, %v584
        %vm620 = vcmp.eq.s32.totalorder %v316, %v588
        %vm621 = vcmp.eq.s32.totalorder %v317, %v584
        %vm622 = vcmp.eq.s32.totalorder %v317, %v588
        %vm623 = vcmp.eq.s32.totalorder %v318, %v584
        %vm624 = vcmp.eq.s32.totalorder %v318, %v588
        %vm625 = vcmp.eq.s32.totalorder %v319, %v584
        %vm626 = vcmp.eq.s32.totalorder %v319, %v588
        %vm627 = vcmp.eq.s32.totalorder %v320, %v584
        %vm628 = vcmp.eq.s32.totalorder %v320, %v588
        %vm629 = vcmp.eq.s32.totalorder %v321, %v584
        %vm630 = vcmp.eq.s32.totalorder %v321, %v588
        %vm631 = vcmp.eq.s32.totalorder %v322, %v584
        %vm632 = vcmp.eq.s32.totalorder %v322, %v588
        %vm633 = vcmp.eq.s32.totalorder %v323, %v584
        %vm634 = vcmp.eq.s32.totalorder %v323, %v588
        %vm635 = vcmp.eq.s32.totalorder %v324, %v584
        %vm636 = vcmp.eq.s32.totalorder %v324, %v588
        %vm637 = vcmp.eq.s32.totalorder %v325, %v584
        %vm638 = vcmp.eq.s32.totalorder %v325, %v588
        %vm639 = vcmp.eq.s32.totalorder %v326, %v584
        %vm640 = vcmp.eq.s32.totalorder %v326, %v588
        %vm641 = vcmp.eq.s32.totalorder %v327, %v584
        %vm642 = vcmp.eq.s32.totalorder %v327, %v588
        %vm643 = vcmp.eq.s32.totalorder %v328, %v584
        %vm644 = vcmp.eq.s32.totalorder %v328, %v588
        %vm645 = vcmp.eq.s32.totalorder %v329, %v584
        %vm646 = vcmp.eq.s32.totalorder %v329, %v588
        %vm647 = vcmp.eq.s32.totalorder %v330, %v584
        %vm648 = vcmp.eq.s32.totalorder %v330, %v588
        %vm649 = vcmp.eq.s32.totalorder %v331, %v584
        %vm650 = vcmp.eq.s32.totalorder %v331, %v588
        %vm651 = vcmp.eq.s32.totalorder %v332, %v584
        %vm652 = vcmp.eq.s32.totalorder %v332, %v588
        %v654 = vlaneseq
        %v655 = vshrl.u32 %v654, 7
        %v656 = vsub.s32 1, %v655
        %v657 = vrot.slane %v293, %v656
        %v658 = vlaneseq
        %v659 = vshrl.u32 %v658, 7
        %v660 = vsub.s32 3, %v659
        %v661 = vrot.slane %v293, %v660
        %v664 = vlaneseq
        %v665 = vshrl.u32 %v664, 7
        %v666 = vsub.s32 1, %v665
        %v667 = vrot.slane %v657, %v666
        %v668 = vlaneseq
        %v669 = vshrl.u32 %v668, 7
        %v670 = vsub.s32 1, %v669
        %v671 = vrot.slane %v661, %v670
        %v672 = vsel %vm589, %v667, 0.0
        %v673 = vsel %vm590, %v671, 0.0
        %v674 = vsel %vm591, %v667, 0.0
        %v675 = vsel %vm592, %v671, 0.0
        %v676 = vsel %vm593, %v667, 0.0
        %v677 = vsel %vm594, %v671, 0.0
        %v678 = vsel %vm595, %v667, 0.0
        %v679 = vsel %vm596, %v671, 0.0
        %v680 = vsel %vm597, %v667, 0.0
        %v681 = vsel %vm598, %v671, 0.0
        %v682 = vsel %vm599, %v667, 0.0
        %v683 = vsel %vm600, %v671, 0.0
        %v684 = vsel %vm601, %v667, 0.0
        %v685 = vsel %vm602, %v671, 0.0
        %v686 = vsel %vm603, %v667, 0.0
        %v687 = vsel %vm604, %v671, 0.0
        %v688 = vsel %vm605, %v667, 0.0
        %v689 = vsel %vm606, %v671, 0.0
        %v690 = vsel %vm607, %v667, 0.0
        %v691 = vsel %vm608, %v671, 0.0
        %v692 = vsel %vm609, %v667, 0.0
        %v693 = vsel %vm610, %v671, 0.0
        %v694 = vsel %vm611, %v667, 0.0
        %v695 = vsel %vm612, %v671, 0.0
        %v696 = vsel %vm613, %v667, 0.0
        %v697 = vsel %vm614, %v671, 0.0
        %v698 = vsel %vm615, %v667, 0.0
        %v699 = vsel %vm616, %v671, 0.0
        %v700 = vsel %vm617, %v667, 0.0
        %v701 = vsel %vm618, %v671, 0.0
        %v702 = vsel %vm619, %v667, 0.0
        %v703 = vsel %vm620, %v671, 0.0
        %v704 = vsel %vm621, %v667, 0.0
        %v705 = vsel %vm622, %v671, 0.0
        %v706 = vsel %vm623, %v667, 0.0
        %v707 = vsel %vm624, %v671, 0.0
        %v708 = vsel %vm625, %v667, 0.0
        %v709 = vsel %vm626, %v671, 0.0
        %v710 = vsel %vm627, %v667, 0.0
        %v711 = vsel %vm628, %v671, 0.0
        %v712 = vsel %vm629, %v667, 0.0
        %v713 = vsel %vm630, %v671, 0.0
        %v714 = vsel %vm631, %v667, 0.0
        %v715 = vsel %vm632, %v671, 0.0
        %v716 = vsel %vm633, %v667, 0.0
        %v717 = vsel %vm634, %v671, 0.0
        %v718 = vsel %vm635, %v667, 0.0
        %v719 = vsel %vm636, %v671, 0.0
        %v720 = vsel %vm637, %v667, 0.0
        %v721 = vsel %vm638, %v671, 0.0
        %v722 = vsel %vm639, %v667, 0.0
        %v723 = vsel %vm640, %v671, 0.0
        %v724 = vsel %vm641, %v667, 0.0
        %v725 = vsel %vm642, %v671, 0.0
        %v726 = vsel %vm643, %v667, 0.0
        %v727 = vsel %vm644, %v671, 0.0
        %v728 = vsel %vm645, %v667, 0.0
        %v729 = vsel %vm646, %v671, 0.0
        %v730 = vsel %vm647, %v667, 0.0
        %v731 = vsel %vm648, %v671, 0.0
        %v732 = vsel %vm649, %v667, 0.0
        %v733 = vsel %vm650, %v671, 0.0
        %v734 = vsel %vm651, %v667, 0.0
        %v735 = vsel %vm652, %v671, 0.0
        %v737 = vlaneseq
        %v738 = vshrl.u32 %v737, 7
        %v739 = vsub.s32 1, %v738
        %v740 = vrot.slane %v297, %v739
        %v741 = vlaneseq
        %v742 = vshrl.u32 %v741, 7
        %v743 = vsub.s32 3, %v742
        %v744 = vrot.slane %v297, %v743
        %v747 = vlaneseq
        %v748 = vshrl.u32 %v747, 7
        %v749 = vsub.s32 1, %v748
        %v750 = vrot.slane %v740, %v749
        %v751 = vlaneseq
        %v752 = vshrl.u32 %v751, 7
        %v753 = vsub.s32 1, %v752
        %v754 = vrot.slane %v744, %v753
        %v755 = vsel %vm509, %v750, %v672
        %v756 = vsel %vm510, %v754, %v673
        %v757 = vsel %vm511, %v750, %v674
        %v758 = vsel %vm512, %v754, %v675
        %v759 = vsel %vm513, %v750, %v676
        %v760 = vsel %vm514, %v754, %v677
        %v761 = vsel %vm515, %v750, %v678
        %v762 = vsel %vm516, %v754, %v679
        %v763 = vsel %vm517, %v750, %v680
        %v764 = vsel %vm518, %v754, %v681
        %v765 = vsel %vm519, %v750, %v682
        %v766 = vsel %vm520, %v754, %v683
        %v767 = vsel %vm521, %v750, %v684
        %v768 = vsel %vm522, %v754, %v685
        %v769 = vsel %vm523, %v750, %v686
        %v770 = vsel %vm524, %v754, %v687
        %v771 = vsel %vm525, %v750, %v688
        %v772 = vsel %vm526, %v754, %v689
        %v773 = vsel %vm527, %v750, %v690
        %v774 = vsel %vm528, %v754, %v691
        %v775 = vsel %vm529, %v750, %v692
        %v776 = vsel %vm530, %v754, %v693
        %v777 = vsel %vm531, %v750, %v694
        %v778 = vsel %vm532, %v754, %v695
        %v779 = vsel %vm533, %v750, %v696
        %v780 = vsel %vm534, %v754, %v697
        %v781 = vsel %vm535, %v750, %v698
        %v782 = vsel %vm536, %v754, %v699
        %v783 = vsel %vm537, %v750, %v700
        %v784 = vsel %vm538, %v754, %v701
        %v785 = vsel %vm539, %v750, %v702
        %v786 = vsel %vm540, %v754, %v703
        %v787 = vsel %vm541, %v750, %v704
        %v788 = vsel %vm542, %v754, %v705
        %v789 = vsel %vm543, %v750, %v706
        %v790 = vsel %vm544, %v754, %v707
        %v791 = vsel %vm545, %v750, %v708
        %v792 = vsel %vm546, %v754, %v709
        %v793 = vsel %vm547, %v750, %v710
        %v794 = vsel %vm548, %v754, %v711
        %v795 = vsel %vm549, %v750, %v712
        %v796 = vsel %vm550, %v754, %v713
        %v797 = vsel %vm551, %v750, %v714
        %v798 = vsel %vm552, %v754, %v715
        %v799 = vsel %vm553, %v750, %v716
        %v800 = vsel %vm554, %v754, %v717
        %v801 = vsel %vm555, %v750, %v718
        %v802 = vsel %vm556, %v754, %v719
        %v803 = vsel %vm557, %v750, %v720
        %v804 = vsel %vm558, %v754, %v721
        %v805 = vsel %vm559, %v750, %v722
        %v806 = vsel %vm560, %v754, %v723
        %v807 = vsel %vm561, %v750, %v724
        %v808 = vsel %vm562, %v754, %v725
        %v809 = vsel %vm563, %v750, %v726
        %v810 = vsel %vm564, %v754, %v727
        %v811 = vsel %vm565, %v750, %v728
        %v812 = vsel %vm566, %v754, %v729
        %v813 = vsel %vm567, %v750, %v730
        %v814 = vsel %vm568, %v754, %v731
        %v815 = vsel %vm569, %v750, %v732
        %v816 = vsel %vm570, %v754, %v733
        %v817 = vsel %vm571, %v750, %v734
        %v818 = vsel %vm572, %v754, %v735
        %v820 = vlaneseq
        %v821 = vshrl.u32 %v820, 7
        %v822 = vsub.s32 1, %v821
        %v823 = vrot.slane %v298, %v822
        %v824 = vlaneseq
        %v825 = vshrl.u32 %v824, 7
        %v826 = vsub.s32 3, %v825
        %v827 = vrot.slane %v298, %v826
        %v830 = vlaneseq
        %v831 = vshrl.u32 %v830, 7
        %v832 = vsub.s32 1, %v831
        %v833 = vrot.slane %v823, %v832
        %v834 = vlaneseq
        %v835 = vshrl.u32 %v834, 7
        %v836 = vsub.s32 1, %v835
        %v837 = vrot.slane %v827, %v836
        %v838 = vsel %vm429, %v833, %v755
        %v839 = vsel %vm430, %v837, %v756
        %v840 = vsel %vm431, %v833, %v757
        %v841 = vsel %vm432, %v837, %v758
        %v842 = vsel %vm433, %v833, %v759
        %v843 = vsel %vm434, %v837, %v760
        %v844 = vsel %vm435, %v833, %v761
        %v845 = vsel %vm436, %v837, %v762
        %v846 = vsel %vm437, %v833, %v763
        %v847 = vsel %vm438, %v837, %v764
        %v848 = vsel %vm439, %v833, %v765
        %v849 = vsel %vm440, %v837, %v766
        %v850 = vsel %vm441, %v833, %v767
        %v851 = vsel %vm442, %v837, %v768
        %v852 = vsel %vm443, %v833, %v769
        %v853 = vsel %vm444, %v837, %v770
        %v854 = vsel %vm445, %v833, %v771
        %v855 = vsel %vm446, %v837, %v772
        %v856 = vsel %vm447, %v833, %v773
        %v857 = vsel %vm448, %v837, %v774
        %v858 = vsel %vm449, %v833, %v775
        %v859 = vsel %vm450, %v837, %v776
        %v860 = vsel %vm451, %v833, %v777
        %v861 = vsel %vm452, %v837, %v778
        %v862 = vsel %vm453, %v833, %v779
        %v863 = vsel %vm454, %v837, %v780
        %v864 = vsel %vm455, %v833, %v781
        %v865 = vsel %vm456, %v837, %v782
        %v866 = vsel %vm457, %v833, %v783
        %v867 = vsel %vm458, %v837, %v784
        %v868 = vsel %vm459, %v833, %v785
        %v869 = vsel %vm460, %v837, %v786
        %v870 = vsel %vm461, %v833, %v787
        %v871 = vsel %vm462, %v837, %v788
        %v872 = vsel %vm463, %v833, %v789
        %v873 = vsel %vm464, %v837, %v790
        %v874 = vsel %vm465, %v833, %v791
        %v875 = vsel %vm466, %v837, %v792
        %v876 = vsel %vm467, %v833, %v793
        %v877 = vsel %vm468, %v837, %v794
        %v878 = vsel %vm469, %v833, %v795
        %v879 = vsel %vm470, %v837, %v796
        %v880 = vsel %vm471, %v833, %v797
        %v881 = vsel %vm472, %v837, %v798
        %v882 = vsel %vm473, %v833, %v799
        %v883 = vsel %vm474, %v837, %v800
        %v884 = vsel %vm475, %v833, %v801
        %v885 = vsel %vm476, %v837, %v802
        %v886 = vsel %vm477, %v833, %v803
        %v887 = vsel %vm478, %v837, %v804
        %v888 = vsel %vm479, %v833, %v805
        %v889 = vsel %vm480, %v837, %v806
        %v890 = vsel %vm481, %v833, %v807
        %v891 = vsel %vm482, %v837, %v808
        %v892 = vsel %vm483, %v833, %v809
        %v893 = vsel %vm484, %v837, %v810
        %v894 = vsel %vm485, %v833, %v811
        %v895 = vsel %vm486, %v837, %v812
        %v896 = vsel %vm487, %v833, %v813
        %v897 = vsel %vm488, %v837, %v814
        %v898 = vsel %vm489, %v833, %v815
        %v899 = vsel %vm490, %v837, %v816
        %v900 = vsel %vm491, %v833, %v817
        %v901 = vsel %vm492, %v837, %v818
        %v903 = vlaneseq
        %v904 = vshrl.u32 %v903, 7
        %v905 = vsub.s32 1, %v904
        %v906 = vrot.slane %v299, %v905
        %v907 = vlaneseq
        %v908 = vshrl.u32 %v907, 7
        %v909 = vsub.s32 3, %v908
        %v910 = vrot.slane %v299, %v909
        %v913 = vlaneseq
        %v914 = vshrl.u32 %v913, 7
        %v915 = vsub.s32 1, %v914
        %v916 = vrot.slane %v906, %v915
        %v917 = vlaneseq
        %v918 = vshrl.u32 %v917, 7
        %v919 = vsub.s32 1, %v918
        %v920 = vrot.slane %v910, %v919
        %v921 = vsel %vm349, %v916, %v838
        %v922 = vsel %vm350, %v920, %v839
        %v923 = vsel %vm351, %v916, %v840
        %v924 = vsel %vm352, %v920, %v841
        %v925 = vsel %vm353, %v916, %v842
        %v926 = vsel %vm354, %v920, %v843
        %v927 = vsel %vm355, %v916, %v844
        %v928 = vsel %vm356, %v920, %v845
        %v929 = vsel %vm357, %v916, %v846
        %v930 = vsel %vm358, %v920, %v847
        %v931 = vsel %vm359, %v916, %v848
        %v932 = vsel %vm360, %v920, %v849
        %v933 = vsel %vm361, %v916, %v850
        %v934 = vsel %vm362, %v920, %v851
        %v935 = vsel %vm363, %v916, %v852
        %v936 = vsel %vm364, %v920, %v853
        %v937 = vsel %vm365, %v916, %v854
        %v938 = vsel %vm366, %v920, %v855
        %v939 = vsel %vm367, %v916, %v856
        %v940 = vsel %vm368, %v920, %v857
        %v941 = vsel %vm369, %v916, %v858
        %v942 = vsel %vm370, %v920, %v859
        %v943 = vsel %vm371, %v916, %v860
        %v944 = vsel %vm372, %v920, %v861
        %v945 = vsel %vm373, %v916, %v862
        %v946 = vsel %vm374, %v920, %v863
        %v947 = vsel %vm375, %v916, %v864
        %v948 = vsel %vm376, %v920, %v865
        %v949 = vsel %vm377, %v916, %v866
        %v950 = vsel %vm378, %v920, %v867
        %v951 = vsel %vm379, %v916, %v868
        %v952 = vsel %vm380, %v920, %v869
        %v953 = vsel %vm381, %v916, %v870
        %v954 = vsel %vm382, %v920, %v871
        %v955 = vsel %vm383, %v916, %v872
        %v956 = vsel %vm384, %v920, %v873
        %v957 = vsel %vm385, %v916, %v874
        %v958 = vsel %vm386, %v920, %v875
        %v959 = vsel %vm387, %v916, %v876
        %v960 = vsel %vm388, %v920, %v877
        %v961 = vsel %vm389, %v916, %v878
        %v962 = vsel %vm390, %v920, %v879
        %v963 = vsel %vm391, %v916, %v880
        %v964 = vsel %vm392, %v920, %v881
        %v965 = vsel %vm393, %v916, %v882
        %v966 = vsel %vm394, %v920, %v883
        %v967 = vsel %vm395, %v916, %v884
        %v968 = vsel %vm396, %v920, %v885
        %v969 = vsel %vm397, %v916, %v886
        %v970 = vsel %vm398, %v920, %v887
        %v971 = vsel %vm399, %v916, %v888
        %v972 = vsel %vm400, %v920, %v889
        %v973 = vsel %vm401, %v916, %v890
        %v974 = vsel %vm402, %v920, %v891
        %v975 = vsel %vm403, %v916, %v892
        %v976 = vsel %vm404, %v920, %v893
        %v977 = vsel %vm405, %v916, %v894
        %v978 = vsel %vm406, %v920, %v895
        %v979 = vsel %vm407, %v916, %v896
        %v980 = vsel %vm408, %v920, %v897
        %v981 = vsel %vm409, %v916, %v898
        %v982 = vsel %vm410, %v920, %v899
        %v983 = vsel %vm411, %v916, %v900
        %v984 = vsel %vm412, %v920, %v901
        %v985 = vld [vmem:[#allocation2] sm:$0xff]
        %v986 = vld [vmem:[%s225] sm:$0xff]
        %v988 = vcombine.high %v986, %v986
        %v990 = vand.u32 %v922, 4294901760
        %991 = vmatprep.subr.mxu0 %v990
        %v992 = vand.u32 %v921, 4294901760
        %993 = vmatpush1.msra.mxu0 %v992
        %v994 = vand.u32 %v924, 4294901760
        %995 = vmatprep.subr.mxu0 %v994
        %v996 = vand.u32 %v923, 4294901760
        %997 = vmatpush1.msra.mxu0 %v996
        %v998 = vand.u32 %v926, 4294901760
        %999 = vmatprep.subr.mxu0 %v998
        %v1000 = vand.u32 %v925, 4294901760
        %1001 = vmatpush1.msra.mxu0 %v1000
        %v1002 = vand.u32 %v928, 4294901760
        %1003 = vmatprep.subr.mxu0 %v1002
        %v1004 = vand.u32 %v927, 4294901760
        %1005 = vmatpush1.msra.mxu0 %v1004
        %v1006 = vand.u32 %v930, 4294901760
        %1007 = vmatprep.subr.mxu0 %v1006
        %v1008 = vand.u32 %v929, 4294901760
        %1009 = vmatpush1.msra.mxu0 %v1008
        %v1010 = vand.u32 %v932, 4294901760
        %1011 = vmatprep.subr.mxu0 %v1010
        %v1012 = vand.u32 %v931, 4294901760
        %1013 = vmatpush1.msra.mxu0 %v1012
        %v1014 = vand.u32 %v934, 4294901760
        %1015 = vmatprep.subr.mxu0 %v1014
        %v1016 = vand.u32 %v933, 4294901760
        %1017 = vmatpush1.msra.mxu0 %v1016
        %v1018 = vand.u32 %v936, 4294901760
        %1019 = vmatprep.subr.mxu0 %v1018
        %v1020 = vand.u32 %v935, 4294901760
        %1021 = vmatpush1.msra.mxu0 %v1020
        %v1022 = vand.u32 %v938, 4294901760
        %1023 = vmatprep.subr.mxu0 %v1022
        %v1024 = vand.u32 %v937, 4294901760
        %1025 = vmatpush1.msra.mxu0 %v1024
        %v1026 = vand.u32 %v940, 4294901760
        %1027 = vmatprep.subr.mxu0 %v1026
        %v1028 = vand.u32 %v939, 4294901760
        %1029 = vmatpush1.msra.mxu0 %v1028
        %v1030 = vand.u32 %v942, 4294901760
        %1031 = vmatprep.subr.mxu0 %v1030
        %v1032 = vand.u32 %v941, 4294901760
        %1033 = vmatpush1.msra.mxu0 %v1032
        %v1034 = vand.u32 %v944, 4294901760
        %1035 = vmatprep.subr.mxu0 %v1034
        %v1036 = vand.u32 %v943, 4294901760
        %1037 = vmatpush1.msra.mxu0 %v1036
        %v1038 = vand.u32 %v946, 4294901760
        %1039 = vmatprep.subr.mxu0 %v1038
        %v1040 = vand.u32 %v945, 4294901760
        %1041 = vmatpush1.msra.mxu0 %v1040
        %v1042 = vand.u32 %v948, 4294901760
        %1043 = vmatprep.subr.mxu0 %v1042
        %v1044 = vand.u32 %v947, 4294901760
        %1045 = vmatpush1.msra.mxu0 %v1044
        %v1046 = vand.u32 %v950, 4294901760
        %1047 = vmatprep.subr.mxu0 %v1046
        %v1048 = vand.u32 %v949, 4294901760
        %1049 = vmatpush1.msra.mxu0 %v1048
        %v1050 = vand.u32 %v952, 4294901760
        %1051 = vmatprep.subr.mxu0 %v1050
        %v1052 = vand.u32 %v951, 4294901760
        %1053 = vmatpush1.msra.mxu0 %v1052
        %v1054 = vand.u32 %v954, 4294901760
        %1055 = vmatprep.subr.mxu0 %v1054
        %v1056 = vand.u32 %v953, 4294901760
        %1057 = vmatpush1.msra.mxu0 %v1056
        %v1058 = vand.u32 %v956, 4294901760
        %1059 = vmatprep.subr.mxu0 %v1058
        %v1060 = vand.u32 %v955, 4294901760
        %1061 = vmatpush1.msra.mxu0 %v1060
        %v1062 = vand.u32 %v958, 4294901760
        %1063 = vmatprep.subr.mxu0 %v1062
        %v1064 = vand.u32 %v957, 4294901760
        %1065 = vmatpush1.msra.mxu0 %v1064
        %v1066 = vand.u32 %v960, 4294901760
        %1067 = vmatprep.subr.mxu0 %v1066
        %v1068 = vand.u32 %v959, 4294901760
        %1069 = vmatpush1.msra.mxu0 %v1068
        %v1070 = vand.u32 %v962, 4294901760
        %1071 = vmatprep.subr.mxu0 %v1070
        %v1072 = vand.u32 %v961, 4294901760
        %1073 = vmatpush1.msra.mxu0 %v1072
        %v1074 = vand.u32 %v964, 4294901760
        %1075 = vmatprep.subr.mxu0 %v1074
        %v1076 = vand.u32 %v963, 4294901760
        %1077 = vmatpush1.msra.mxu0 %v1076
        %v1078 = vand.u32 %v966, 4294901760
        %1079 = vmatprep.subr.mxu0 %v1078
        %v1080 = vand.u32 %v965, 4294901760
        %1081 = vmatpush1.msra.mxu0 %v1080
        %v1082 = vand.u32 %v968, 4294901760
        %1083 = vmatprep.subr.mxu0 %v1082
        %v1084 = vand.u32 %v967, 4294901760
        %1085 = vmatpush1.msra.mxu0 %v1084
        %v1086 = vand.u32 %v970, 4294901760
        %1087 = vmatprep.subr.mxu0 %v1086
        %v1088 = vand.u32 %v969, 4294901760
        %1089 = vmatpush1.msra.mxu0 %v1088
        %v1090 = vand.u32 %v972, 4294901760
        %1091 = vmatprep.subr.mxu0 %v1090
        %v1092 = vand.u32 %v971, 4294901760
        %1093 = vmatpush1.msra.mxu0 %v1092
        %v1094 = vand.u32 %v974, 4294901760
        %1095 = vmatprep.subr.mxu0 %v1094
        %v1096 = vand.u32 %v973, 4294901760
        %1097 = vmatpush1.msra.mxu0 %v1096
        %v1098 = vand.u32 %v976, 4294901760
        %1099 = vmatprep.subr.mxu0 %v1098
        %v1100 = vand.u32 %v975, 4294901760
        %1101 = vmatpush1.msra.mxu0 %v1100
        %v1102 = vand.u32 %v978, 4294901760
        %1103 = vmatprep.subr.mxu0 %v1102
        %v1104 = vand.u32 %v977, 4294901760
        %1105 = vmatpush1.msra.mxu0 %v1104
        %v1106 = vand.u32 %v980, 4294901760
        %1107 = vmatprep.subr.mxu0 %v1106
        %v1108 = vand.u32 %v979, 4294901760
        %1109 = vmatpush1.msra.mxu0 %v1108
        %v1110 = vand.u32 %v982, 4294901760
        %1111 = vmatprep.subr.mxu0 %v1110
        %v1112 = vand.u32 %v981, 4294901760
        %1113 = vmatpush1.msra.mxu0 %v1112
        %v1114 = vand.u32 %v984, 4294901760
        %1115 = vmatprep.subr.mxu0 %v1114
        %v1116 = vand.u32 %v983, 4294901760
        %1117 = vmatpush1.msra.mxu0 %v1116
        %v1118 = vand.u32 %v988, 4294901760
        %v1119 = vsub.f32 %v988, %v1118
        %v1120 = vand.u32 %v1119, 4294901760
        %v1121 = vsub.f32 %v1119, %v1120
        %v1122 = vand.u32 %v1121, 4294901760
        %1123 = vmatprep.mubr.f32.mxu0 %v1122
        %v1124 = vand.u32 %v986, 4294901760
        %v1125 = vsub.f32 %v986, %v1124
        %v1126 = vand.u32 %v1125, 4294901760
        %v1127 = vsub.f32 %v1125, %v1126
        %v1128 = vand.u32 %v1127, 4294901760
        %1129 = vmatmul.mubr.f32.gmra.mrb[0].mxu0 %v1128
        %v1130 = vpop.f32.mrb[0].mxu0
        %v1131 = vadd.f32 0.0, %v1130
        %v1132 = vpop.f32.mrb[0].mxu0
        %v1133 = vadd.f32 0.0, %v1132
        %1134 = vdwg.mxu0
        %v1135 = vand.u32 %v922, 4294901760
        %v1136 = vsub.f32 %v922, %v1135
        %v1137 = vand.u32 %v1136, 4294901760
        %v1138 = vsub.f32 %v1136, %v1137
        %v1139 = vand.u32 %v1138, 4294901760
        %1140 = vmatprep.subr.mxu0 %v1139
        %v1141 = vand.u32 %v921, 4294901760
        %v1142 = vsub.f32 %v921, %v1141
        %v1143 = vand.u32 %v1142, 4294901760
        %v1144 = vsub.f32 %v1142, %v1143
        %v1145 = vand.u32 %v1144, 4294901760
        %1146 = vmatpush1.msra.mxu0 %v1145
        %v1147 = vand.u32 %v924, 4294901760
        %v1148 = vsub.f32 %v924, %v1147
        %v1149 = vand.u32 %v1148, 4294901760
        %v1150 = vsub.f32 %v1148, %v1149
        %v1151 = vand.u32 %v1150, 4294901760
        %1152 = vmatprep.subr.mxu0 %v1151
        %v1153 = vand.u32 %v923, 4294901760
        %v1154 = vsub.f32 %v923, %v1153
        %v1155 = vand.u32 %v1154, 4294901760
        %v1156 = vsub.f32 %v1154, %v1155
        %v1157 = vand.u32 %v1156, 4294901760
        %1158 = vmatpush1.msra.mxu0 %v1157
        %v1159 = vand.u32 %v926, 4294901760
        %v1160 = vsub.f32 %v926, %v1159
        %v1161 = vand.u32 %v1160, 4294901760
        %v1162 = vsub.f32 %v1160, %v1161
        %v1163 = vand.u32 %v1162, 4294901760
        %1164 = vmatprep.subr.mxu0 %v1163
        %v1165 = vand.u32 %v925, 4294901760
        %v1166 = vsub.f32 %v925, %v1165
        %v1167 = vand.u32 %v1166, 4294901760
        %v1168 = vsub.f32 %v1166, %v1167
        %v1169 = vand.u32 %v1168, 4294901760
        %1170 = vmatpush1.msra.mxu0 %v1169
        %v1171 = vand.u32 %v928, 4294901760
        %v1172 = vsub.f32 %v928, %v1171
        %v1173 = vand.u32 %v1172, 4294901760
        %v1174 = vsub.f32 %v1172, %v1173
        %v1175 = vand.u32 %v1174, 4294901760
        %1176 = vmatprep.subr.mxu0 %v1175
        %v1177 = vand.u32 %v927, 4294901760
        %v1178 = vsub.f32 %v927, %v1177
        %v1179 = vand.u32 %v1178, 4294901760
        %v1180 = vsub.f32 %v1178, %v1179
        %v1181 = vand.u32 %v1180, 4294901760
        %1182 = vmatpush1.msra.mxu0 %v1181
        %v1183 = vand.u32 %v930, 4294901760
        %v1184 = vsub.f32 %v930, %v1183
        %v1185 = vand.u32 %v1184, 4294901760
        %v1186 = vsub.f32 %v1184, %v1185
        %v1187 = vand.u32 %v1186, 4294901760
        %1188 = vmatprep.subr.mxu0 %v1187
        %v1189 = vand.u32 %v929, 4294901760
        %v1190 = vsub.f32 %v929, %v1189
        %v1191 = vand.u32 %v1190, 4294901760
        %v1192 = vsub.f32 %v1190, %v1191
        %v1193 = vand.u32 %v1192, 4294901760
        %1194 = vmatpush1.msra.mxu0 %v1193
        %v1195 = vand.u32 %v932, 4294901760
        %v1196 = vsub.f32 %v932, %v1195
        %v1197 = vand.u32 %v1196, 4294901760
        %v1198 = vsub.f32 %v1196, %v1197
        %v1199 = vand.u32 %v1198, 4294901760
        %1200 = vmatprep.subr.mxu0 %v1199
        %v1201 = vand.u32 %v931, 4294901760
        %v1202 = vsub.f32 %v931, %v1201
        %v1203 = vand.u32 %v1202, 4294901760
        %v1204 = vsub.f32 %v1202, %v1203
        %v1205 = vand.u32 %v1204, 4294901760
        %1206 = vmatpush1.msra.mxu0 %v1205
        %v1207 = vand.u32 %v934, 4294901760
        %v1208 = vsub.f32 %v934, %v1207
        %v1209 = vand.u32 %v1208, 4294901760
        %v1210 = vsub.f32 %v1208, %v1209
        %v1211 = vand.u32 %v1210, 4294901760
        %1212 = vmatprep.subr.mxu0 %v1211
        %v1213 = vand.u32 %v933, 4294901760
        %v1214 = vsub.f32 %v933, %v1213
        %v1215 = vand.u32 %v1214, 4294901760
        %v1216 = vsub.f32 %v1214, %v1215
        %v1217 = vand.u32 %v1216, 4294901760
        %1218 = vmatpush1.msra.mxu0 %v1217
        %v1219 = vand.u32 %v936, 4294901760
        %v1220 = vsub.f32 %v936, %v1219
        %v1221 = vand.u32 %v1220, 4294901760
        %v1222 = vsub.f32 %v1220, %v1221
        %v1223 = vand.u32 %v1222, 4294901760
        %1224 = vmatprep.subr.mxu0 %v1223
        %v1225 = vand.u32 %v935, 4294901760
        %v1226 = vsub.f32 %v935, %v1225
        %v1227 = vand.u32 %v1226, 4294901760
        %v1228 = vsub.f32 %v1226, %v1227
        %v1229 = vand.u32 %v1228, 4294901760
        %1230 = vmatpush1.msra.mxu0 %v1229
        %v1231 = vand.u32 %v938, 4294901760
        %v1232 = vsub.f32 %v938, %v1231
        %v1233 = vand.u32 %v1232, 4294901760
        %v1234 = vsub.f32 %v1232, %v1233
        %v1235 = vand.u32 %v1234, 4294901760
        %1236 = vmatprep.subr.mxu0 %v1235
        %v1237 = vand.u32 %v937, 4294901760
        %v1238 = vsub.f32 %v937, %v1237
        %v1239 = vand.u32 %v1238, 4294901760
        %v1240 = vsub.f32 %v1238, %v1239
        %v1241 = vand.u32 %v1240, 4294901760
        %1242 = vmatpush1.msra.mxu0 %v1241
        %v1243 = vand.u32 %v940, 4294901760
        %v1244 = vsub.f32 %v940, %v1243
        %v1245 = vand.u32 %v1244, 4294901760
        %v1246 = vsub.f32 %v1244, %v1245
        %v1247 = vand.u32 %v1246, 4294901760
        %1248 = vmatprep.subr.mxu0 %v1247
        %v1249 = vand.u32 %v939, 4294901760
        %v1250 = vsub.f32 %v939, %v1249
        %v1251 = vand.u32 %v1250, 4294901760
        %v1252 = vsub.f32 %v1250, %v1251
        %v1253 = vand.u32 %v1252, 4294901760
        %1254 = vmatpush1.msra.mxu0 %v1253
        %v1255 = vand.u32 %v942, 4294901760
        %v1256 = vsub.f32 %v942, %v1255
        %v1257 = vand.u32 %v1256, 4294901760
        %v1258 = vsub.f32 %v1256, %v1257
        %v1259 = vand.u32 %v1258, 4294901760
        %1260 = vmatprep.subr.mxu0 %v1259
        %v1261 = vand.u32 %v941, 4294901760
        %v1262 = vsub.f32 %v941, %v1261
        %v1263 = vand.u32 %v1262, 4294901760
        %v1264 = vsub.f32 %v1262, %v1263
        %v1265 = vand.u32 %v1264, 4294901760
        %1266 = vmatpush1.msra.mxu0 %v1265
        %v1267 = vand.u32 %v944, 4294901760
        %v1268 = vsub.f32 %v944, %v1267
        %v1269 = vand.u32 %v1268, 4294901760
        %v1270 = vsub.f32 %v1268, %v1269
        %v1271 = vand.u32 %v1270, 4294901760
        %1272 = vmatprep.subr.mxu0 %v1271
        %v1273 = vand.u32 %v943, 4294901760
        %v1274 = vsub.f32 %v943, %v1273
        %v1275 = vand.u32 %v1274, 4294901760
        %v1276 = vsub.f32 %v1274, %v1275
        %v1277 = vand.u32 %v1276, 4294901760
        %1278 = vmatpush1.msra.mxu0 %v1277
        %v1279 = vand.u32 %v946, 4294901760
        %v1280 = vsub.f32 %v946, %v1279
        %v1281 = vand.u32 %v1280, 4294901760
        %v1282 = vsub.f32 %v1280, %v1281
        %v1283 = vand.u32 %v1282, 4294901760
        %1284 = vmatprep.subr.mxu0 %v1283
        %v1285 = vand.u32 %v945, 4294901760
        %v1286 = vsub.f32 %v945, %v1285
        %v1287 = vand.u32 %v1286, 4294901760
        %v1288 = vsub.f32 %v1286, %v1287
        %v1289 = vand.u32 %v1288, 4294901760
        %1290 = vmatpush1.msra.mxu0 %v1289
        %v1291 = vand.u32 %v948, 4294901760
        %v1292 = vsub.f32 %v948, %v1291
        %v1293 = vand.u32 %v1292, 4294901760
        %v1294 = vsub.f32 %v1292, %v1293
        %v1295 = vand.u32 %v1294, 4294901760
        %1296 = vmatprep.subr.mxu0 %v1295
        %v1297 = vand.u32 %v947, 4294901760
        %v1298 = vsub.f32 %v947, %v1297
        %v1299 = vand.u32 %v1298, 4294901760
        %v1300 = vsub.f32 %v1298, %v1299
        %v1301 = vand.u32 %v1300, 4294901760
        %1302 = vmatpush1.msra.mxu0 %v1301
        %v1303 = vand.u32 %v950, 4294901760
        %v1304 = vsub.f32 %v950, %v1303
        %v1305 = vand.u32 %v1304, 4294901760
        %v1306 = vsub.f32 %v1304, %v1305
        %v1307 = vand.u32 %v1306, 4294901760
        %1308 = vmatprep.subr.mxu0 %v1307
        %v1309 = vand.u32 %v949, 4294901760
        %v1310 = vsub.f32 %v949, %v1309
        %v1311 = vand.u32 %v1310, 4294901760
        %v1312 = vsub.f32 %v1310, %v1311
        %v1313 = vand.u32 %v1312, 4294901760
        %1314 = vmatpush1.msra.mxu0 %v1313
        %v1315 = vand.u32 %v952, 4294901760
        %v1316 = vsub.f32 %v952, %v1315
        %v1317 = vand.u32 %v1316, 4294901760
        %v1318 = vsub.f32 %v1316, %v1317
        %v1319 = vand.u32 %v1318, 4294901760
        %1320 = vmatprep.subr.mxu0 %v1319
        %v1321 = vand.u32 %v951, 4294901760
        %v1322 = vsub.f32 %v951, %v1321
        %v1323 = vand.u32 %v1322, 4294901760
        %v1324 = vsub.f32 %v1322, %v1323
        %v1325 = vand.u32 %v1324, 4294901760
        %1326 = vmatpush1.msra.mxu0 %v1325
        %v1327 = vand.u32 %v954, 4294901760
        %v1328 = vsub.f32 %v954, %v1327
        %v1329 = vand.u32 %v1328, 4294901760
        %v1330 = vsub.f32 %v1328, %v1329
        %v1331 = vand.u32 %v1330, 4294901760
        %1332 = vmatprep.subr.mxu0 %v1331
        %v1333 = vand.u32 %v953, 4294901760
        %v1334 = vsub.f32 %v953, %v1333
        %v1335 = vand.u32 %v1334, 4294901760
        %v1336 = vsub.f32 %v1334, %v1335
        %v1337 = vand.u32 %v1336, 4294901760
        %1338 = vmatpush1.msra.mxu0 %v1337
        %v1339 = vand.u32 %v956, 4294901760
        %v1340 = vsub.f32 %v956, %v1339
        %v1341 = vand.u32 %v1340, 4294901760
        %v1342 = vsub.f32 %v1340, %v1341
        %v1343 = vand.u32 %v1342, 4294901760
        %1344 = vmatprep.subr.mxu0 %v1343
        %v1345 = vand.u32 %v955, 4294901760
        %v1346 = vsub.f32 %v955, %v1345
        %v1347 = vand.u32 %v1346, 4294901760
        %v1348 = vsub.f32 %v1346, %v1347
        %v1349 = vand.u32 %v1348, 4294901760
        %1350 = vmatpush1.msra.mxu0 %v1349
        %v1351 = vand.u32 %v958, 4294901760
        %v1352 = vsub.f32 %v958, %v1351
        %v1353 = vand.u32 %v1352, 4294901760
        %v1354 = vsub.f32 %v1352, %v1353
        %v1355 = vand.u32 %v1354, 4294901760
        %1356 = vmatprep.subr.mxu0 %v1355
        %v1357 = vand.u32 %v957, 4294901760
        %v1358 = vsub.f32 %v957, %v1357
        %v1359 = vand.u32 %v1358, 4294901760
        %v1360 = vsub.f32 %v1358, %v1359
        %v1361 = vand.u32 %v1360, 4294901760
        %1362 = vmatpush1.msra.mxu0 %v1361
        %v1363 = vand.u32 %v960, 4294901760
        %v1364 = vsub.f32 %v960, %v1363
        %v1365 = vand.u32 %v1364, 4294901760
        %v1366 = vsub.f32 %v1364, %v1365
        %v1367 = vand.u32 %v1366, 4294901760
        %1368 = vmatprep.subr.mxu0 %v1367
        %v1369 = vand.u32 %v959, 4294901760
        %v1370 = vsub.f32 %v959, %v1369
        %v1371 = vand.u32 %v1370, 4294901760
        %v1372 = vsub.f32 %v1370, %v1371
        %v1373 = vand.u32 %v1372, 4294901760
        %1374 = vmatpush1.msra.mxu0 %v1373
        %v1375 = vand.u32 %v962, 4294901760
        %v1376 = vsub.f32 %v962, %v1375
        %v1377 = vand.u32 %v1376, 4294901760
        %v1378 = vsub.f32 %v1376, %v1377
        %v1379 = vand.u32 %v1378, 4294901760
        %1380 = vmatprep.subr.mxu0 %v1379
        %v1381 = vand.u32 %v961, 4294901760
        %v1382 = vsub.f32 %v961, %v1381
        %v1383 = vand.u32 %v1382, 4294901760
        %v1384 = vsub.f32 %v1382, %v1383
        %v1385 = vand.u32 %v1384, 4294901760
        %1386 = vmatpush1.msra.mxu0 %v1385
        %v1387 = vand.u32 %v964, 4294901760
        %v1388 = vsub.f32 %v964, %v1387
        %v1389 = vand.u32 %v1388, 4294901760
        %v1390 = vsub.f32 %v1388, %v1389
        %v1391 = vand.u32 %v1390, 4294901760
        %1392 = vmatprep.subr.mxu0 %v1391
        %v1393 = vand.u32 %v963, 4294901760
        %v1394 = vsub.f32 %v963, %v1393
        %v1395 = vand.u32 %v1394, 4294901760
        %v1396 = vsub.f32 %v1394, %v1395
        %v1397 = vand.u32 %v1396, 4294901760
        %1398 = vmatpush1.msra.mxu0 %v1397
        %v1399 = vand.u32 %v966, 4294901760
        %v1400 = vsub.f32 %v966, %v1399
        %v1401 = vand.u32 %v1400, 4294901760
        %v1402 = vsub.f32 %v1400, %v1401
        %v1403 = vand.u32 %v1402, 4294901760
        %1404 = vmatprep.subr.mxu0 %v1403
        %v1405 = vand.u32 %v965, 4294901760
        %v1406 = vsub.f32 %v965, %v1405
        %v1407 = vand.u32 %v1406, 4294901760
        %v1408 = vsub.f32 %v1406, %v1407
        %v1409 = vand.u32 %v1408, 4294901760
        %1410 = vmatpush1.msra.mxu0 %v1409
        %v1411 = vand.u32 %v968, 4294901760
        %v1412 = vsub.f32 %v968, %v1411
        %v1413 = vand.u32 %v1412, 4294901760
        %v1414 = vsub.f32 %v1412, %v1413
        %v1415 = vand.u32 %v1414, 4294901760
        %1416 = vmatprep.subr.mxu0 %v1415
        %v1417 = vand.u32 %v967, 4294901760
        %v1418 = vsub.f32 %v967, %v1417
        %v1419 = vand.u32 %v1418, 4294901760
        %v1420 = vsub.f32 %v1418, %v1419
        %v1421 = vand.u32 %v1420, 4294901760
        %1422 = vmatpush1.msra.mxu0 %v1421
        %v1423 = vand.u32 %v970, 4294901760
        %v1424 = vsub.f32 %v970, %v1423
        %v1425 = vand.u32 %v1424, 4294901760
        %v1426 = vsub.f32 %v1424, %v1425
        %v1427 = vand.u32 %v1426, 4294901760
        %1428 = vmatprep.subr.mxu0 %v1427
        %v1429 = vand.u32 %v969, 4294901760
        %v1430 = vsub.f32 %v969, %v1429
        %v1431 = vand.u32 %v1430, 4294901760
        %v1432 = vsub.f32 %v1430, %v1431
        %v1433 = vand.u32 %v1432, 4294901760
        %1434 = vmatpush1.msra.mxu0 %v1433
        %v1435 = vand.u32 %v972, 4294901760
        %v1436 = vsub.f32 %v972, %v1435
        %v1437 = vand.u32 %v1436, 4294901760
        %v1438 = vsub.f32 %v1436, %v1437
        %v1439 = vand.u32 %v1438, 4294901760
        %1440 = vmatprep.subr.mxu0 %v1439
        %v1441 = vand.u32 %v971, 4294901760
        %v1442 = vsub.f32 %v971, %v1441
        %v1443 = vand.u32 %v1442, 4294901760
        %v1444 = vsub.f32 %v1442, %v1443
        %v1445 = vand.u32 %v1444, 4294901760
        %1446 = vmatpush1.msra.mxu0 %v1445
        %v1447 = vand.u32 %v974, 4294901760
        %v1448 = vsub.f32 %v974, %v1447
        %v1449 = vand.u32 %v1448, 4294901760
        %v1450 = vsub.f32 %v1448, %v1449
        %v1451 = vand.u32 %v1450, 4294901760
        %1452 = vmatprep.subr.mxu0 %v1451
        %v1453 = vand.u32 %v973, 4294901760
        %v1454 = vsub.f32 %v973, %v1453
        %v1455 = vand.u32 %v1454, 4294901760
        %v1456 = vsub.f32 %v1454, %v1455
        %v1457 = vand.u32 %v1456, 4294901760
        %1458 = vmatpush1.msra.mxu0 %v1457
        %v1459 = vand.u32 %v976, 4294901760
        %v1460 = vsub.f32 %v976, %v1459
        %v1461 = vand.u32 %v1460, 4294901760
        %v1462 = vsub.f32 %v1460, %v1461
        %v1463 = vand.u32 %v1462, 4294901760
        %1464 = vmatprep.subr.mxu0 %v1463
        %v1465 = vand.u32 %v975, 4294901760
        %v1466 = vsub.f32 %v975, %v1465
        %v1467 = vand.u32 %v1466, 4294901760
        %v1468 = vsub.f32 %v1466, %v1467
        %v1469 = vand.u32 %v1468, 4294901760
        %1470 = vmatpush1.msra.mxu0 %v1469
        %v1471 = vand.u32 %v978, 4294901760
        %v1472 = vsub.f32 %v978, %v1471
        %v1473 = vand.u32 %v1472, 4294901760
        %v1474 = vsub.f32 %v1472, %v1473
        %v1475 = vand.u32 %v1474, 4294901760
        %1476 = vmatprep.subr.mxu0 %v1475
        %v1477 = vand.u32 %v977, 4294901760
        %v1478 = vsub.f32 %v977, %v1477
        %v1479 = vand.u32 %v1478, 4294901760
        %v1480 = vsub.f32 %v1478, %v1479
        %v1481 = vand.u32 %v1480, 4294901760
        %1482 = vmatpush1.msra.mxu0 %v1481
        %v1483 = vand.u32 %v980, 4294901760
        %v1484 = vsub.f32 %v980, %v1483
        %v1485 = vand.u32 %v1484, 4294901760
        %v1486 = vsub.f32 %v1484, %v1485
        %v1487 = vand.u32 %v1486, 4294901760
        %1488 = vmatprep.subr.mxu0 %v1487
        %v1489 = vand.u32 %v979, 4294901760
        %v1490 = vsub.f32 %v979, %v1489
        %v1491 = vand.u32 %v1490, 4294901760
        %v1492 = vsub.f32 %v1490, %v1491
        %v1493 = vand.u32 %v1492, 4294901760
        %1494 = vmatpush1.msra.mxu0 %v1493
        %v1495 = vand.u32 %v982, 4294901760
        %v1496 = vsub.f32 %v982, %v1495
        %v1497 = vand.u32 %v1496, 4294901760
        %v1498 = vsub.f32 %v1496, %v1497
        %v1499 = vand.u32 %v1498, 4294901760
        %1500 = vmatprep.subr.mxu0 %v1499
        %v1501 = vand.u32 %v981, 4294901760
        %v1502 = vsub.f32 %v981, %v1501
        %v1503 = vand.u32 %v1502, 4294901760
        %v1504 = vsub.f32 %v1502, %v1503
        %v1505 = vand.u32 %v1504, 4294901760
        %1506 = vmatpush1.msra.mxu0 %v1505
        %v1507 = vand.u32 %v984, 4294901760
        %v1508 = vsub.f32 %v984, %v1507
        %v1509 = vand.u32 %v1508, 4294901760
        %v1510 = vsub.f32 %v1508, %v1509
        %v1511 = vand.u32 %v1510, 4294901760
        %1512 = vmatprep.subr.mxu0 %v1511
        %v1513 = vand.u32 %v983, 4294901760
        %v1514 = vsub.f32 %v983, %v1513
        %v1515 = vand.u32 %v1514, 4294901760
        %v1516 = vsub.f32 %v1514, %v1515
        %v1517 = vand.u32 %v1516, 4294901760
        %1518 = vmatpush1.msra.mxu0 %v1517
        %v1519 = vand.u32 %v988, 4294901760
        %1520 = vmatprep.mubr.f32.mxu0 %v1519
        %v1521 = vand.u32 %v986, 4294901760
        %1522 = vmatmul.mubr.f32.gmra.mrb[0].mxu0 %v1521
        %v1523 = vpop.f32.mrb[0].mxu0
        %v1524 = vadd.f32 %v1131, %v1523
        %v1525 = vpop.f32.mrb[0].mxu0
        %v1526 = vadd.f32 %v1133, %v1525
        %1527 = vdwg.mxu0
        %v1528 = vand.u32 %v922, 4294901760
        %v1529 = vsub.f32 %v922, %v1528
        %1530 = vmatprep.subr.mxu0 %v1529
        %v1531 = vand.u32 %v921, 4294901760
        %v1532 = vsub.f32 %v921, %v1531
        %1533 = vmatpush1.msra.mxu0 %v1532
        %v1534 = vand.u32 %v924, 4294901760
        %v1535 = vsub.f32 %v924, %v1534
        %1536 = vmatprep.subr.mxu0 %v1535
        %v1537 = vand.u32 %v923, 4294901760
        %v1538 = vsub.f32 %v923, %v1537
        %1539 = vmatpush1.msra.mxu0 %v1538
        %v1540 = vand.u32 %v926, 4294901760
        %v1541 = vsub.f32 %v926, %v1540
        %1542 = vmatprep.subr.mxu0 %v1541
        %v1543 = vand.u32 %v925, 4294901760
        %v1544 = vsub.f32 %v925, %v1543
        %1545 = vmatpush1.msra.mxu0 %v1544
        %v1546 = vand.u32 %v928, 4294901760
        %v1547 = vsub.f32 %v928, %v1546
        %1548 = vmatprep.subr.mxu0 %v1547
        %v1549 = vand.u32 %v927, 4294901760
        %v1550 = vsub.f32 %v927, %v1549
        %1551 = vmatpush1.msra.mxu0 %v1550
        %v1552 = vand.u32 %v930, 4294901760
        %v1553 = vsub.f32 %v930, %v1552
        %1554 = vmatprep.subr.mxu0 %v1553
        %v1555 = vand.u32 %v929, 4294901760
        %v1556 = vsub.f32 %v929, %v1555
        %1557 = vmatpush1.msra.mxu0 %v1556
        %v1558 = vand.u32 %v932, 4294901760
        %v1559 = vsub.f32 %v932, %v1558
        %1560 = vmatprep.subr.mxu0 %v1559
        %v1561 = vand.u32 %v931, 4294901760
        %v1562 = vsub.f32 %v931, %v1561
        %1563 = vmatpush1.msra.mxu0 %v1562
        %v1564 = vand.u32 %v934, 4294901760
        %v1565 = vsub.f32 %v934, %v1564
        %1566 = vmatprep.subr.mxu0 %v1565
        %v1567 = vand.u32 %v933, 4294901760
        %v1568 = vsub.f32 %v933, %v1567
        %1569 = vmatpush1.msra.mxu0 %v1568
        %v1570 = vand.u32 %v936, 4294901760
        %v1571 = vsub.f32 %v936, %v1570
        %1572 = vmatprep.subr.mxu0 %v1571
        %v1573 = vand.u32 %v935, 4294901760
        %v1574 = vsub.f32 %v935, %v1573
        %1575 = vmatpush1.msra.mxu0 %v1574
        %v1576 = vand.u32 %v938, 4294901760
        %v1577 = vsub.f32 %v938, %v1576
        %1578 = vmatprep.subr.mxu0 %v1577
        %v1579 = vand.u32 %v937, 4294901760
        %v1580 = vsub.f32 %v937, %v1579
        %1581 = vmatpush1.msra.mxu0 %v1580
        %v1582 = vand.u32 %v940, 4294901760
        %v1583 = vsub.f32 %v940, %v1582
        %1584 = vmatprep.subr.mxu0 %v1583
        %v1585 = vand.u32 %v939, 4294901760
        %v1586 = vsub.f32 %v939, %v1585
        %1587 = vmatpush1.msra.mxu0 %v1586
        %v1588 = vand.u32 %v942, 4294901760
        %v1589 = vsub.f32 %v942, %v1588
        %1590 = vmatprep.subr.mxu0 %v1589
        %v1591 = vand.u32 %v941, 4294901760
        %v1592 = vsub.f32 %v941, %v1591
        %1593 = vmatpush1.msra.mxu0 %v1592
        %v1594 = vand.u32 %v944, 4294901760
        %v1595 = vsub.f32 %v944, %v1594
        %1596 = vmatprep.subr.mxu0 %v1595
        %v1597 = vand.u32 %v943, 4294901760
        %v1598 = vsub.f32 %v943, %v1597
        %1599 = vmatpush1.msra.mxu0 %v1598
        %v1600 = vand.u32 %v946, 4294901760
        %v1601 = vsub.f32 %v946, %v1600
        %1602 = vmatprep.subr.mxu0 %v1601
        %v1603 = vand.u32 %v945, 4294901760
        %v1604 = vsub.f32 %v945, %v1603
        %1605 = vmatpush1.msra.mxu0 %v1604
        %v1606 = vand.u32 %v948, 4294901760
        %v1607 = vsub.f32 %v948, %v1606
        %1608 = vmatprep.subr.mxu0 %v1607
        %v1609 = vand.u32 %v947, 4294901760
        %v1610 = vsub.f32 %v947, %v1609
        %1611 = vmatpush1.msra.mxu0 %v1610
        %v1612 = vand.u32 %v950, 4294901760
        %v1613 = vsub.f32 %v950, %v1612
        %1614 = vmatprep.subr.mxu0 %v1613
        %v1615 = vand.u32 %v949, 4294901760
        %v1616 = vsub.f32 %v949, %v1615
        %1617 = vmatpush1.msra.mxu0 %v1616
        %v1618 = vand.u32 %v952, 4294901760
        %v1619 = vsub.f32 %v952, %v1618
        %1620 = vmatprep.subr.mxu0 %v1619
        %v1621 = vand.u32 %v951, 4294901760
        %v1622 = vsub.f32 %v951, %v1621
        %1623 = vmatpush1.msra.mxu0 %v1622
        %v1624 = vand.u32 %v954, 4294901760
        %v1625 = vsub.f32 %v954, %v1624
        %1626 = vmatprep.subr.mxu0 %v1625
        %v1627 = vand.u32 %v953, 4294901760
        %v1628 = vsub.f32 %v953, %v1627
        %1629 = vmatpush1.msra.mxu0 %v1628
        %v1630 = vand.u32 %v956, 4294901760
        %v1631 = vsub.f32 %v956, %v1630
        %1632 = vmatprep.subr.mxu0 %v1631
        %v1633 = vand.u32 %v955, 4294901760
        %v1634 = vsub.f32 %v955, %v1633
        %1635 = vmatpush1.msra.mxu0 %v1634
        %v1636 = vand.u32 %v958, 4294901760
        %v1637 = vsub.f32 %v958, %v1636
        %1638 = vmatprep.subr.mxu0 %v1637
        %v1639 = vand.u32 %v957, 4294901760
        %v1640 = vsub.f32 %v957, %v1639
        %1641 = vmatpush1.msra.mxu0 %v1640
        %v1642 = vand.u32 %v960, 4294901760
        %v1643 = vsub.f32 %v960, %v1642
        %1644 = vmatprep.subr.mxu0 %v1643
        %v1645 = vand.u32 %v959, 4294901760
        %v1646 = vsub.f32 %v959, %v1645
        %1647 = vmatpush1.msra.mxu0 %v1646
        %v1648 = vand.u32 %v962, 4294901760
        %v1649 = vsub.f32 %v962, %v1648
        %1650 = vmatprep.subr.mxu0 %v1649
        %v1651 = vand.u32 %v961, 4294901760
        %v1652 = vsub.f32 %v961, %v1651
        %1653 = vmatpush1.msra.mxu0 %v1652
        %v1654 = vand.u32 %v964, 4294901760
        %v1655 = vsub.f32 %v964, %v1654
        %1656 = vmatprep.subr.mxu0 %v1655
        %v1657 = vand.u32 %v963, 4294901760
        %v1658 = vsub.f32 %v963, %v1657
        %1659 = vmatpush1.msra.mxu0 %v1658
        %v1660 = vand.u32 %v966, 4294901760
        %v1661 = vsub.f32 %v966, %v1660
        %1662 = vmatprep.subr.mxu0 %v1661
        %v1663 = vand.u32 %v965, 4294901760
        %v1664 = vsub.f32 %v965, %v1663
        %1665 = vmatpush1.msra.mxu0 %v1664
        %v1666 = vand.u32 %v968, 4294901760
        %v1667 = vsub.f32 %v968, %v1666
        %1668 = vmatprep.subr.mxu0 %v1667
        %v1669 = vand.u32 %v967, 4294901760
        %v1670 = vsub.f32 %v967, %v1669
        %1671 = vmatpush1.msra.mxu0 %v1670
        %v1672 = vand.u32 %v970, 4294901760
        %v1673 = vsub.f32 %v970, %v1672
        %1674 = vmatprep.subr.mxu0 %v1673
        %v1675 = vand.u32 %v969, 4294901760
        %v1676 = vsub.f32 %v969, %v1675
        %1677 = vmatpush1.msra.mxu0 %v1676
        %v1678 = vand.u32 %v972, 4294901760
        %v1679 = vsub.f32 %v972, %v1678
        %1680 = vmatprep.subr.mxu0 %v1679
        %v1681 = vand.u32 %v971, 4294901760
        %v1682 = vsub.f32 %v971, %v1681
        %1683 = vmatpush1.msra.mxu0 %v1682
        %v1684 = vand.u32 %v974, 4294901760
        %v1685 = vsub.f32 %v974, %v1684
        %1686 = vmatprep.subr.mxu0 %v1685
        %v1687 = vand.u32 %v973, 4294901760
        %v1688 = vsub.f32 %v973, %v1687
        %1689 = vmatpush1.msra.mxu0 %v1688
        %v1690 = vand.u32 %v976, 4294901760
        %v1691 = vsub.f32 %v976, %v1690
        %1692 = vmatprep.subr.mxu0 %v1691
        %v1693 = vand.u32 %v975, 4294901760
        %v1694 = vsub.f32 %v975, %v1693
        %1695 = vmatpush1.msra.mxu0 %v1694
        %v1696 = vand.u32 %v978, 4294901760
        %v1697 = vsub.f32 %v978, %v1696
        %1698 = vmatprep.subr.mxu0 %v1697
        %v1699 = vand.u32 %v977, 4294901760
        %v1700 = vsub.f32 %v977, %v1699
        %1701 = vmatpush1.msra.mxu0 %v1700
        %v1702 = vand.u32 %v980, 4294901760
        %v1703 = vsub.f32 %v980, %v1702
        %1704 = vmatprep.subr.mxu0 %v1703
        %v1705 = vand.u32 %v979, 4294901760
        %v1706 = vsub.f32 %v979, %v1705
        %1707 = vmatpush1.msra.mxu0 %v1706
        %v1708 = vand.u32 %v982, 4294901760
        %v1709 = vsub.f32 %v982, %v1708
        %1710 = vmatprep.subr.mxu0 %v1709
        %v1711 = vand.u32 %v981, 4294901760
        %v1712 = vsub.f32 %v981, %v1711
        %1713 = vmatpush1.msra.mxu0 %v1712
        %v1714 = vand.u32 %v984, 4294901760
        %v1715 = vsub.f32 %v984, %v1714
        %1716 = vmatprep.subr.mxu0 %v1715
        %v1717 = vand.u32 %v983, 4294901760
        %v1718 = vsub.f32 %v983, %v1717
        %1719 = vmatpush1.msra.mxu0 %v1718
        %v1720 = vand.u32 %v988, 4294901760
        %v1721 = vsub.f32 %v988, %v1720
        %1722 = vmatprep.mubr.f32.mxu0 %v1721
        %v1723 = vand.u32 %v986, 4294901760
        %v1724 = vsub.f32 %v986, %v1723
        %1725 = vmatmul.mubr.f32.gmra.mrb[0].mxu0 %v1724
        %v1726 = vpop.f32.mrb[0].mxu0
        %v1727 = vadd.f32 %v1524, %v1726
        %v1728 = vpop.f32.mrb[0].mxu0
        %v1729 = vadd.f32 %v1526, %v1728
        %1730 = vdwg.mxu0
        %v1731 = vand.u32 %v922, 4294901760
        %1732 = vmatprep.subr.mxu0 %v1731
        %v1733 = vand.u32 %v921, 4294901760
        %1734 = vmatpush1.msra.mxu0 %v1733
        %v1735 = vand.u32 %v924, 4294901760
        %1736 = vmatprep.subr.mxu0 %v1735
        %v1737 = vand.u32 %v923, 4294901760
        %1738 = vmatpush1.msra.mxu0 %v1737
        %v1739 = vand.u32 %v926, 4294901760
        %1740 = vmatprep.subr.mxu0 %v1739
        %v1741 = vand.u32 %v925, 4294901760
        %1742 = vmatpush1.msra.mxu0 %v1741
        %v1743 = vand.u32 %v928, 4294901760
        %1744 = vmatprep.subr.mxu0 %v1743
        %v1745 = vand.u32 %v927, 4294901760
        %1746 = vmatpush1.msra.mxu0 %v1745
        %v1747 = vand.u32 %v930, 4294901760
        %1748 = vmatprep.subr.mxu0 %v1747
        %v1749 = vand.u32 %v929, 4294901760
        %1750 = vmatpush1.msra.mxu0 %v1749
        %v1751 = vand.u32 %v932, 4294901760
        %1752 = vmatprep.subr.mxu0 %v1751
        %v1753 = vand.u32 %v931, 4294901760
        %1754 = vmatpush1.msra.mxu0 %v1753
        %v1755 = vand.u32 %v934, 4294901760
        %1756 = vmatprep.subr.mxu0 %v1755
        %v1757 = vand.u32 %v933, 4294901760
        %1758 = vmatpush1.msra.mxu0 %v1757
        %v1759 = vand.u32 %v936, 4294901760
        %1760 = vmatprep.subr.mxu0 %v1759
        %v1761 = vand.u32 %v935, 4294901760
        %1762 = vmatpush1.msra.mxu0 %v1761
        %v1763 = vand.u32 %v938, 4294901760
        %1764 = vmatprep.subr.mxu0 %v1763
        %v1765 = vand.u32 %v937, 4294901760
        %1766 = vmatpush1.msra.mxu0 %v1765
        %v1767 = vand.u32 %v940, 4294901760
        %1768 = vmatprep.subr.mxu0 %v1767
        %v1769 = vand.u32 %v939, 4294901760
        %1770 = vmatpush1.msra.mxu0 %v1769
        %v1771 = vand.u32 %v942, 4294901760
        %1772 = vmatprep.subr.mxu0 %v1771
        %v1773 = vand.u32 %v941, 4294901760
        %1774 = vmatpush1.msra.mxu0 %v1773
        %v1775 = vand.u32 %v944, 4294901760
        %1776 = vmatprep.subr.mxu0 %v1775
        %v1777 = vand.u32 %v943, 4294901760
        %1778 = vmatpush1.msra.mxu0 %v1777
        %v1779 = vand.u32 %v946, 4294901760
        %1780 = vmatprep.subr.mxu0 %v1779
        %v1781 = vand.u32 %v945, 4294901760
        %1782 = vmatpush1.msra.mxu0 %v1781
        %v1783 = vand.u32 %v948, 4294901760
        %1784 = vmatprep.subr.mxu0 %v1783
        %v1785 = vand.u32 %v947, 4294901760
        %1786 = vmatpush1.msra.mxu0 %v1785
        %v1787 = vand.u32 %v950, 4294901760
        %1788 = vmatprep.subr.mxu0 %v1787
        %v1789 = vand.u32 %v949, 4294901760
        %1790 = vmatpush1.msra.mxu0 %v1789
        %v1791 = vand.u32 %v952, 4294901760
        %1792 = vmatprep.subr.mxu0 %v1791
        %v1793 = vand.u32 %v951, 4294901760
        %1794 = vmatpush1.msra.mxu0 %v1793
        %v1795 = vand.u32 %v954, 4294901760
        %1796 = vmatprep.subr.mxu0 %v1795
        %v1797 = vand.u32 %v953, 4294901760
        %1798 = vmatpush1.msra.mxu0 %v1797
        %v1799 = vand.u32 %v956, 4294901760
        %1800 = vmatprep.subr.mxu0 %v1799
        %v1801 = vand.u32 %v955, 4294901760
        %1802 = vmatpush1.msra.mxu0 %v1801
        %v1803 = vand.u32 %v958, 4294901760
        %1804 = vmatprep.subr.mxu0 %v1803
        %v1805 = vand.u32 %v957, 4294901760
        %1806 = vmatpush1.msra.mxu0 %v1805
        %v1807 = vand.u32 %v960, 4294901760
        %1808 = vmatprep.subr.mxu0 %v1807
        %v1809 = vand.u32 %v959, 4294901760
        %1810 = vmatpush1.msra.mxu0 %v1809
        %v1811 = vand.u32 %v962, 4294901760
        %1812 = vmatprep.subr.mxu0 %v1811
        %v1813 = vand.u32 %v961, 4294901760
        %1814 = vmatpush1.msra.mxu0 %v1813
        %v1815 = vand.u32 %v964, 4294901760
        %1816 = vmatprep.subr.mxu0 %v1815
        %v1817 = vand.u32 %v963, 4294901760
        %1818 = vmatpush1.msra.mxu0 %v1817
        %v1819 = vand.u32 %v966, 4294901760
        %1820 = vmatprep.subr.mxu0 %v1819
        %v1821 = vand.u32 %v965, 4294901760
        %1822 = vmatpush1.msra.mxu0 %v1821
        %v1823 = vand.u32 %v968, 4294901760
        %1824 = vmatprep.subr.mxu0 %v1823
        %v1825 = vand.u32 %v967, 4294901760
        %1826 = vmatpush1.msra.mxu0 %v1825
        %v1827 = vand.u32 %v970, 4294901760
        %1828 = vmatprep.subr.mxu0 %v1827
        %v1829 = vand.u32 %v969, 4294901760
        %1830 = vmatpush1.msra.mxu0 %v1829
        %v1831 = vand.u32 %v972, 4294901760
        %1832 = vmatprep.subr.mxu0 %v1831
        %v1833 = vand.u32 %v971, 4294901760
        %1834 = vmatpush1.msra.mxu0 %v1833
        %v1835 = vand.u32 %v974, 4294901760
        %1836 = vmatprep.subr.mxu0 %v1835
        %v1837 = vand.u32 %v973, 4294901760
        %1838 = vmatpush1.msra.mxu0 %v1837
        %v1839 = vand.u32 %v976, 4294901760
        %1840 = vmatprep.subr.mxu0 %v1839
        %v1841 = vand.u32 %v975, 4294901760
        %1842 = vmatpush1.msra.mxu0 %v1841
        %v1843 = vand.u32 %v978, 4294901760
        %1844 = vmatprep.subr.mxu0 %v1843
        %v1845 = vand.u32 %v977, 4294901760
        %1846 = vmatpush1.msra.mxu0 %v1845
        %v1847 = vand.u32 %v980, 4294901760
        %1848 = vmatprep.subr.mxu0 %v1847
        %v1849 = vand.u32 %v979, 4294901760
        %1850 = vmatpush1.msra.mxu0 %v1849
        %v1851 = vand.u32 %v982, 4294901760
        %1852 = vmatprep.subr.mxu0 %v1851
        %v1853 = vand.u32 %v981, 4294901760
        %1854 = vmatpush1.msra.mxu0 %v1853
        %v1855 = vand.u32 %v984, 4294901760
        %1856 = vmatprep.subr.mxu0 %v1855
        %v1857 = vand.u32 %v983, 4294901760
        %1858 = vmatpush1.msra.mxu0 %v1857
        %v1859 = vand.u32 %v988, 4294901760
        %v1860 = vsub.f32 %v988, %v1859
        %v1861 = vand.u32 %v1860, 4294901760
        %1862 = vmatprep.mubr.f32.mxu0 %v1861
        %v1863 = vand.u32 %v986, 4294901760
        %v1864 = vsub.f32 %v986, %v1863
        %v1865 = vand.u32 %v1864, 4294901760
        %1866 = vmatmul.mubr.f32.gmra.mrb[0].mxu0 %v1865
        %v1867 = vpop.f32.mrb[0].mxu0
        %v1868 = vadd.f32 %v1727, %v1867
        %v1869 = vpop.f32.mrb[0].mxu0
        %v1870 = vadd.f32 %v1729, %v1869
        %1871 = vdwg.mxu0
        %v1872 = vand.u32 %v922, 4294901760
        %v1873 = vsub.f32 %v922, %v1872
        %v1874 = vand.u32 %v1873, 4294901760
        %1875 = vmatprep.subr.mxu0 %v1874
        %v1876 = vand.u32 %v921, 4294901760
        %v1877 = vsub.f32 %v921, %v1876
        %v1878 = vand.u32 %v1877, 4294901760
        %1879 = vmatpush1.msra.mxu0 %v1878
        %v1880 = vand.u32 %v924, 4294901760
        %v1881 = vsub.f32 %v924, %v1880
        %v1882 = vand.u32 %v1881, 4294901760
        %1883 = vmatprep.subr.mxu0 %v1882
        %v1884 = vand.u32 %v923, 4294901760
        %v1885 = vsub.f32 %v923, %v1884
        %v1886 = vand.u32 %v1885, 4294901760
        %1887 = vmatpush1.msra.mxu0 %v1886
        %v1888 = vand.u32 %v926, 4294901760
        %v1889 = vsub.f32 %v926, %v1888
        %v1890 = vand.u32 %v1889, 4294901760
        %1891 = vmatprep.subr.mxu0 %v1890
        %v1892 = vand.u32 %v925, 4294901760
        %v1893 = vsub.f32 %v925, %v1892
        %v1894 = vand.u32 %v1893, 4294901760
        %1895 = vmatpush1.msra.mxu0 %v1894
        %v1896 = vand.u32 %v928, 4294901760
        %v1897 = vsub.f32 %v928, %v1896
        %v1898 = vand.u32 %v1897, 4294901760
        %1899 = vmatprep.subr.mxu0 %v1898
        %v1900 = vand.u32 %v927, 4294901760
        %v1901 = vsub.f32 %v927, %v1900
        %v1902 = vand.u32 %v1901, 4294901760
        %1903 = vmatpush1.msra.mxu0 %v1902
        %v1904 = vand.u32 %v930, 4294901760
        %v1905 = vsub.f32 %v930, %v1904
        %v1906 = vand.u32 %v1905, 4294901760
        %1907 = vmatprep.subr.mxu0 %v1906
        %v1908 = vand.u32 %v929, 4294901760
        %v1909 = vsub.f32 %v929, %v1908
        %v1910 = vand.u32 %v1909, 4294901760
        %1911 = vmatpush1.msra.mxu0 %v1910
        %v1912 = vand.u32 %v932, 4294901760
        %v1913 = vsub.f32 %v932, %v1912
        %v1914 = vand.u32 %v1913, 4294901760
        %1915 = vmatprep.subr.mxu0 %v1914
        %v1916 = vand.u32 %v931, 4294901760
        %v1917 = vsub.f32 %v931, %v1916
        %v1918 = vand.u32 %v1917, 4294901760
        %1919 = vmatpush1.msra.mxu0 %v1918
        %v1920 = vand.u32 %v934, 4294901760
        %v1921 = vsub.f32 %v934, %v1920
        %v1922 = vand.u32 %v1921, 4294901760
        %1923 = vmatprep.subr.mxu0 %v1922
        %v1924 = vand.u32 %v933, 4294901760
        %v1925 = vsub.f32 %v933, %v1924
        %v1926 = vand.u32 %v1925, 4294901760
        %1927 = vmatpush1.msra.mxu0 %v1926
        %v1928 = vand.u32 %v936, 4294901760
        %v1929 = vsub.f32 %v936, %v1928
        %v1930 = vand.u32 %v1929, 4294901760
        %1931 = vmatprep.subr.mxu0 %v1930
        %v1932 = vand.u32 %v935, 4294901760
        %v1933 = vsub.f32 %v935, %v1932
        %v1934 = vand.u32 %v1933, 4294901760
        %1935 = vmatpush1.msra.mxu0 %v1934
        %v1936 = vand.u32 %v938, 4294901760
        %v1937 = vsub.f32 %v938, %v1936
        %v1938 = vand.u32 %v1937, 4294901760
        %1939 = vmatprep.subr.mxu0 %v1938
        %v1940 = vand.u32 %v937, 4294901760
        %v1941 = vsub.f32 %v937, %v1940
        %v1942 = vand.u32 %v1941, 4294901760
        %1943 = vmatpush1.msra.mxu0 %v1942
        %v1944 = vand.u32 %v940, 4294901760
        %v1945 = vsub.f32 %v940, %v1944
        %v1946 = vand.u32 %v1945, 4294901760
        %1947 = vmatprep.subr.mxu0 %v1946
        %v1948 = vand.u32 %v939, 4294901760
        %v1949 = vsub.f32 %v939, %v1948
        %v1950 = vand.u32 %v1949, 4294901760
        %1951 = vmatpush1.msra.mxu0 %v1950
        %v1952 = vand.u32 %v942, 4294901760
        %v1953 = vsub.f32 %v942, %v1952
        %v1954 = vand.u32 %v1953, 4294901760
        %1955 = vmatprep.subr.mxu0 %v1954
        %v1956 = vand.u32 %v941, 4294901760
        %v1957 = vsub.f32 %v941, %v1956
        %v1958 = vand.u32 %v1957, 4294901760
        %1959 = vmatpush1.msra.mxu0 %v1958
        %v1960 = vand.u32 %v944, 4294901760
        %v1961 = vsub.f32 %v944, %v1960
        %v1962 = vand.u32 %v1961, 4294901760
        %1963 = vmatprep.subr.mxu0 %v1962
        %v1964 = vand.u32 %v943, 4294901760
        %v1965 = vsub.f32 %v943, %v1964
        %v1966 = vand.u32 %v1965, 4294901760
        %1967 = vmatpush1.msra.mxu0 %v1966
        %v1968 = vand.u32 %v946, 4294901760
        %v1969 = vsub.f32 %v946, %v1968
        %v1970 = vand.u32 %v1969, 4294901760
        %1971 = vmatprep.subr.mxu0 %v1970
        %v1972 = vand.u32 %v945, 4294901760
        %v1973 = vsub.f32 %v945, %v1972
        %v1974 = vand.u32 %v1973, 4294901760
        %1975 = vmatpush1.msra.mxu0 %v1974
        %v1976 = vand.u32 %v948, 4294901760
        %v1977 = vsub.f32 %v948, %v1976
        %v1978 = vand.u32 %v1977, 4294901760
        %1979 = vmatprep.subr.mxu0 %v1978
        %v1980 = vand.u32 %v947, 4294901760
        %v1981 = vsub.f32 %v947, %v1980
        %v1982 = vand.u32 %v1981, 4294901760
        %1983 = vmatpush1.msra.mxu0 %v1982
        %v1984 = vand.u32 %v950, 4294901760
        %v1985 = vsub.f32 %v950, %v1984
        %v1986 = vand.u32 %v1985, 4294901760
        %1987 = vmatprep.subr.mxu0 %v1986
        %v1988 = vand.u32 %v949, 4294901760
        %v1989 = vsub.f32 %v949, %v1988
        %v1990 = vand.u32 %v1989, 4294901760
        %1991 = vmatpush1.msra.mxu0 %v1990
        %v1992 = vand.u32 %v952, 4294901760
        %v1993 = vsub.f32 %v952, %v1992
        %v1994 = vand.u32 %v1993, 4294901760
        %1995 = vmatprep.subr.mxu0 %v1994
        %v1996 = vand.u32 %v951, 4294901760
        %v1997 = vsub.f32 %v951, %v1996
        %v1998 = vand.u32 %v1997, 4294901760
        %1999 = vmatpush1.msra.mxu0 %v1998
        %v2000 = vand.u32 %v954, 4294901760
        %v2001 = vsub.f32 %v954, %v2000
        %v2002 = vand.u32 %v2001, 4294901760
        %2003 = vmatprep.subr.mxu0 %v2002
        %v2004 = vand.u32 %v953, 4294901760
        %v2005 = vsub.f32 %v953, %v2004
        %v2006 = vand.u32 %v2005, 4294901760
        %2007 = vmatpush1.msra.mxu0 %v2006
        %v2008 = vand.u32 %v956, 4294901760
        %v2009 = vsub.f32 %v956, %v2008
        %v2010 = vand.u32 %v2009, 4294901760
        %2011 = vmatprep.subr.mxu0 %v2010
        %v2012 = vand.u32 %v955, 4294901760
        %v2013 = vsub.f32 %v955, %v2012
        %v2014 = vand.u32 %v2013, 4294901760
        %2015 = vmatpush1.msra.mxu0 %v2014
        %v2016 = vand.u32 %v958, 4294901760
        %v2017 = vsub.f32 %v958, %v2016
        %v2018 = vand.u32 %v2017, 4294901760
        %2019 = vmatprep.subr.mxu0 %v2018
        %v2020 = vand.u32 %v957, 4294901760
        %v2021 = vsub.f32 %v957, %v2020
        %v2022 = vand.u32 %v2021, 4294901760
        %2023 = vmatpush1.msra.mxu0 %v2022
        %v2024 = vand.u32 %v960, 4294901760
        %v2025 = vsub.f32 %v960, %v2024
        %v2026 = vand.u32 %v2025, 4294901760
        %2027 = vmatprep.subr.mxu0 %v2026
        %v2028 = vand.u32 %v959, 4294901760
        %v2029 = vsub.f32 %v959, %v2028
        %v2030 = vand.u32 %v2029, 4294901760
        %2031 = vmatpush1.msra.mxu0 %v2030
        %v2032 = vand.u32 %v962, 4294901760
        %v2033 = vsub.f32 %v962, %v2032
        %v2034 = vand.u32 %v2033, 4294901760
        %2035 = vmatprep.subr.mxu0 %v2034
        %v2036 = vand.u32 %v961, 4294901760
        %v2037 = vsub.f32 %v961, %v2036
        %v2038 = vand.u32 %v2037, 4294901760
        %2039 = vmatpush1.msra.mxu0 %v2038
        %v2040 = vand.u32 %v964, 4294901760
        %v2041 = vsub.f32 %v964, %v2040
        %v2042 = vand.u32 %v2041, 4294901760
        %2043 = vmatprep.subr.mxu0 %v2042
        %v2044 = vand.u32 %v963, 4294901760
        %v2045 = vsub.f32 %v963, %v2044
        %v2046 = vand.u32 %v2045, 4294901760
        %2047 = vmatpush1.msra.mxu0 %v2046
        %v2048 = vand.u32 %v966, 4294901760
        %v2049 = vsub.f32 %v966, %v2048
        %v2050 = vand.u32 %v2049, 4294901760
        %2051 = vmatprep.subr.mxu0 %v2050
        %v2052 = vand.u32 %v965, 4294901760
        %v2053 = vsub.f32 %v965, %v2052
        %v2054 = vand.u32 %v2053, 4294901760
        %2055 = vmatpush1.msra.mxu0 %v2054
        %v2056 = vand.u32 %v968, 4294901760
        %v2057 = vsub.f32 %v968, %v2056
        %v2058 = vand.u32 %v2057, 4294901760
        %2059 = vmatprep.subr.mxu0 %v2058
        %v2060 = vand.u32 %v967, 4294901760
        %v2061 = vsub.f32 %v967, %v2060
        %v2062 = vand.u32 %v2061, 4294901760
        %2063 = vmatpush1.msra.mxu0 %v2062
        %v2064 = vand.u32 %v970, 4294901760
        %v2065 = vsub.f32 %v970, %v2064
        %v2066 = vand.u32 %v2065, 4294901760
        %2067 = vmatprep.subr.mxu0 %v2066
        %v2068 = vand.u32 %v969, 4294901760
        %v2069 = vsub.f32 %v969, %v2068
        %v2070 = vand.u32 %v2069, 4294901760
        %2071 = vmatpush1.msra.mxu0 %v2070
        %v2072 = vand.u32 %v972, 4294901760
        %v2073 = vsub.f32 %v972, %v2072
        %v2074 = vand.u32 %v2073, 4294901760
        %2075 = vmatprep.subr.mxu0 %v2074
        %v2076 = vand.u32 %v971, 4294901760
        %v2077 = vsub.f32 %v971, %v2076
        %v2078 = vand.u32 %v2077, 4294901760
        %2079 = vmatpush1.msra.mxu0 %v2078
        %v2080 = vand.u32 %v974, 4294901760
        %v2081 = vsub.f32 %v974, %v2080
        %v2082 = vand.u32 %v2081, 4294901760
        %2083 = vmatprep.subr.mxu0 %v2082
        %v2084 = vand.u32 %v973, 4294901760
        %v2085 = vsub.f32 %v973, %v2084
        %v2086 = vand.u32 %v2085, 4294901760
        %2087 = vmatpush1.msra.mxu0 %v2086
        %v2088 = vand.u32 %v976, 4294901760
        %v2089 = vsub.f32 %v976, %v2088
        %v2090 = vand.u32 %v2089, 4294901760
        %2091 = vmatprep.subr.mxu0 %v2090
        %v2092 = vand.u32 %v975, 4294901760
        %v2093 = vsub.f32 %v975, %v2092
        %v2094 = vand.u32 %v2093, 4294901760
        %2095 = vmatpush1.msra.mxu0 %v2094
        %v2096 = vand.u32 %v978, 4294901760
        %v2097 = vsub.f32 %v978, %v2096
        %v2098 = vand.u32 %v2097, 4294901760
        %2099 = vmatprep.subr.mxu0 %v2098
        %v2100 = vand.u32 %v977, 4294901760
        %v2101 = vsub.f32 %v977, %v2100
        %v2102 = vand.u32 %v2101, 4294901760
        %2103 = vmatpush1.msra.mxu0 %v2102
        %v2104 = vand.u32 %v980, 4294901760
        %v2105 = vsub.f32 %v980, %v2104
        %v2106 = vand.u32 %v2105, 4294901760
        %2107 = vmatprep.subr.mxu0 %v2106
        %v2108 = vand.u32 %v979, 4294901760
        %v2109 = vsub.f32 %v979, %v2108
        %v2110 = vand.u32 %v2109, 4294901760
        %2111 = vmatpush1.msra.mxu0 %v2110
        %v2112 = vand.u32 %v982, 4294901760
        %v2113 = vsub.f32 %v982, %v2112
        %v2114 = vand.u32 %v2113, 4294901760
        %2115 = vmatprep.subr.mxu0 %v2114
        %v2116 = vand.u32 %v981, 4294901760
        %v2117 = vsub.f32 %v981, %v2116
        %v2118 = vand.u32 %v2117, 4294901760
        %2119 = vmatpush1.msra.mxu0 %v2118
        %v2120 = vand.u32 %v984, 4294901760
        %v2121 = vsub.f32 %v984, %v2120
        %v2122 = vand.u32 %v2121, 4294901760
        %2123 = vmatprep.subr.mxu0 %v2122
        %v2124 = vand.u32 %v983, 4294901760
        %v2125 = vsub.f32 %v983, %v2124
        %v2126 = vand.u32 %v2125, 4294901760
        %2127 = vmatpush1.msra.mxu0 %v2126
        %v2128 = vand.u32 %v988, 4294901760
        %2129 = vmatprep.mubr.f32.mxu0 %v2128
        %v2130 = vand.u32 %v986, 4294901760
        %2131 = vmatmul.mubr.f32.gmra.mrb[0].mxu0 %v2130
        %v2132 = vpop.f32.mrb[0].mxu0
        %v2133 = vadd.f32 %v1868, %v2132
        %v2134 = vpop.f32.mrb[0].mxu0
        %v2135 = vadd.f32 %v1870, %v2134
        %2136 = vdwg.mxu0
        %v2137 = vand.u32 %v922, 4294901760
        %2138 = vmatprep.subr.mxu0 %v2137
        %v2139 = vand.u32 %v921, 4294901760
        %2140 = vmatpush1.msra.mxu0 %v2139
        %v2141 = vand.u32 %v924, 4294901760
        %2142 = vmatprep.subr.mxu0 %v2141
        %v2143 = vand.u32 %v923, 4294901760
        %2144 = vmatpush1.msra.mxu0 %v2143
        %v2145 = vand.u32 %v926, 4294901760
        %2146 = vmatprep.subr.mxu0 %v2145
        %v2147 = vand.u32 %v925, 4294901760
        %2148 = vmatpush1.msra.mxu0 %v2147
        %v2149 = vand.u32 %v928, 4294901760
        %2150 = vmatprep.subr.mxu0 %v2149
        %v2151 = vand.u32 %v927, 4294901760
        %2152 = vmatpush1.msra.mxu0 %v2151
        %v2153 = vand.u32 %v930, 4294901760
        %2154 = vmatprep.subr.mxu0 %v2153
        %v2155 = vand.u32 %v929, 4294901760
        %2156 = vmatpush1.msra.mxu0 %v2155
        %v2157 = vand.u32 %v932, 4294901760
        %2158 = vmatprep.subr.mxu0 %v2157
        %v2159 = vand.u32 %v931, 4294901760
        %2160 = vmatpush1.msra.mxu0 %v2159
        %v2161 = vand.u32 %v934, 4294901760
        %2162 = vmatprep.subr.mxu0 %v2161
        %v2163 = vand.u32 %v933, 4294901760
        %2164 = vmatpush1.msra.mxu0 %v2163
        %v2165 = vand.u32 %v936, 4294901760
        %2166 = vmatprep.subr.mxu0 %v2165
        %v2167 = vand.u32 %v935, 4294901760
        %2168 = vmatpush1.msra.mxu0 %v2167
        %v2169 = vand.u32 %v938, 4294901760
        %2170 = vmatprep.subr.mxu0 %v2169
        %v2171 = vand.u32 %v937, 4294901760
        %2172 = vmatpush1.msra.mxu0 %v2171
        %v2173 = vand.u32 %v940, 4294901760
        %2174 = vmatprep.subr.mxu0 %v2173
        %v2175 = vand.u32 %v939, 4294901760
        %2176 = vmatpush1.msra.mxu0 %v2175
        %v2177 = vand.u32 %v942, 4294901760
        %2178 = vmatprep.subr.mxu0 %v2177
        %v2179 = vand.u32 %v941, 4294901760
        %2180 = vmatpush1.msra.mxu0 %v2179
        %v2181 = vand.u32 %v944, 4294901760
        %2182 = vmatprep.subr.mxu0 %v2181
        %v2183 = vand.u32 %v943, 4294901760
        %2184 = vmatpush1.msra.mxu0 %v2183
        %v2185 = vand.u32 %v946, 4294901760
        %2186 = vmatprep.subr.mxu0 %v2185
        %v2187 = vand.u32 %v945, 4294901760
        %2188 = vmatpush1.msra.mxu0 %v2187
        %v2189 = vand.u32 %v948, 4294901760
        %2190 = vmatprep.subr.mxu0 %v2189
        %v2191 = vand.u32 %v947, 4294901760
        %2192 = vmatpush1.msra.mxu0 %v2191
        %v2193 = vand.u32 %v950, 4294901760
        %2194 = vmatprep.subr.mxu0 %v2193
        %v2195 = vand.u32 %v949, 4294901760
        %2196 = vmatpush1.msra.mxu0 %v2195
        %v2197 = vand.u32 %v952, 4294901760
        %2198 = vmatprep.subr.mxu0 %v2197
        %v2199 = vand.u32 %v951, 4294901760
        %2200 = vmatpush1.msra.mxu0 %v2199
        %v2201 = vand.u32 %v954, 4294901760
        %2202 = vmatprep.subr.mxu0 %v2201
        %v2203 = vand.u32 %v953, 4294901760
        %2204 = vmatpush1.msra.mxu0 %v2203
        %v2205 = vand.u32 %v956, 4294901760
        %2206 = vmatprep.subr.mxu0 %v2205
        %v2207 = vand.u32 %v955, 4294901760
        %2208 = vmatpush1.msra.mxu0 %v2207
        %v2209 = vand.u32 %v958, 4294901760
        %2210 = vmatprep.subr.mxu0 %v2209
        %v2211 = vand.u32 %v957, 4294901760
        %2212 = vmatpush1.msra.mxu0 %v2211
        %v2213 = vand.u32 %v960, 4294901760
        %2214 = vmatprep.subr.mxu0 %v2213
        %v2215 = vand.u32 %v959, 4294901760
        %2216 = vmatpush1.msra.mxu0 %v2215
        %v2217 = vand.u32 %v962, 4294901760
        %2218 = vmatprep.subr.mxu0 %v2217
        %v2219 = vand.u32 %v961, 4294901760
        %2220 = vmatpush1.msra.mxu0 %v2219
        %v2221 = vand.u32 %v964, 4294901760
        %2222 = vmatprep.subr.mxu0 %v2221
        %v2223 = vand.u32 %v963, 4294901760
        %2224 = vmatpush1.msra.mxu0 %v2223
        %v2225 = vand.u32 %v966, 4294901760
        %2226 = vmatprep.subr.mxu0 %v2225
        %v2227 = vand.u32 %v965, 4294901760
        %2228 = vmatpush1.msra.mxu0 %v2227
        %v2229 = vand.u32 %v968, 4294901760
        %2230 = vmatprep.subr.mxu0 %v2229
        %v2231 = vand.u32 %v967, 4294901760
        %2232 = vmatpush1.msra.mxu0 %v2231
        %v2233 = vand.u32 %v970, 4294901760
        %2234 = vmatprep.subr.mxu0 %v2233
        %v2235 = vand.u32 %v969, 4294901760
        %2236 = vmatpush1.msra.mxu0 %v2235
        %v2237 = vand.u32 %v972, 4294901760
        %2238 = vmatprep.subr.mxu0 %v2237
        %v2239 = vand.u32 %v971, 4294901760
        %2240 = vmatpush1.msra.mxu0 %v2239
        %v2241 = vand.u32 %v974, 4294901760
        %2242 = vmatprep.subr.mxu0 %v2241
        %v2243 = vand.u32 %v973, 4294901760
        %2244 = vmatpush1.msra.mxu0 %v2243
        %v2245 = vand.u32 %v976, 4294901760
        %2246 = vmatprep.subr.mxu0 %v2245
        %v2247 = vand.u32 %v975, 4294901760
        %2248 = vmatpush1.msra.mxu0 %v2247
        %v2249 = vand.u32 %v978, 4294901760
        %2250 = vmatprep.subr.mxu0 %v2249
        %v2251 = vand.u32 %v977, 4294901760
        %2252 = vmatpush1.msra.mxu0 %v2251
        %v2253 = vand.u32 %v980, 4294901760
        %2254 = vmatprep.subr.mxu0 %v2253
        %v2255 = vand.u32 %v979, 4294901760
        %2256 = vmatpush1.msra.mxu0 %v2255
        %v2257 = vand.u32 %v982, 4294901760
        %2258 = vmatprep.subr.mxu0 %v2257
        %v2259 = vand.u32 %v981, 4294901760
        %2260 = vmatpush1.msra.mxu0 %v2259
        %v2261 = vand.u32 %v984, 4294901760
        %2262 = vmatprep.subr.mxu0 %v2261
        %v2263 = vand.u32 %v983, 4294901760
        %2264 = vmatpush1.msra.mxu0 %v2263
        %v2265 = vand.u32 %v988, 4294901760
        %2266 = vmatprep.mubr.f32.mxu0 %v2265
        %v2267 = vand.u32 %v986, 4294901760
        %2268 = vmatmul.mubr.f32.gmra.mrb[0].mxu0 %v2267
        %v2269 = vpop.f32.mrb[0].mxu0
        %v2270 = vadd.f32 %v2133, %v2269
        %v2271 = vpop.f32.mrb[0].mxu0
        %v2272 = vadd.f32 %v2135, %v2271
        %2273 = vdwg.mxu0
        %v2276 = vcombine.low %v2270, %v2272
        %v2278 = vadd.f32 %v985, %v2276
        %2279 = vst [vmem:[#allocation2] sm:$0xff] %v2278
        // Predicated region
        $region41: #{tpu_custom_call.1} parent=27 // pred_check
          %p2280 = pneg %p271
        $region42: #{tpu_custom_call.1} parent=27 // pred_check_branch
          %2282 = sbr.rel (%p2280) target = $region44
        $region43: #{tpu_custom_call.1} parent=27 // pred_region
          %vm2283 = vcmp.gt.f32.partialorder %v276, 0.0
          %vm2284 = vcmp.lt.f32.partialorder %v276, 15.0
          %vm2285 = vmand %vm2283, %vm2284
          %v2286 = vsel %vm2283, 1, 0
          %v2287 = vrot.slane %v2286, 7
          %v2288 = vrot.slane %v2287, 2
          %vm2289 = vcmp.ne.s32.totalorder %v2288, 0
          %vm2290 = vmand %vm2285, %vm2289
          %v2291 = vsel %vm2284, 1, 0
          %v2292 = vrot.slane %v2291, 7
          %v2293 = vrot.slane %v2292, 2
          %vm2294 = vcmp.ne.s32.totalorder %v2293, 0
          %vm2295 = vmand %vm2290, %vm2294
          %v2296 = vsel %vm2295, 1, 0
          %v2297 = vcvt.s32.f32 %v2296
          %v2298 = vld [vmem:[#allocation2] sm:$0xff]
          %v2300 = vlaneseq
          %v2301 = vshrl.u32 %v2300, 7
          %v2302 = vsub.s32 0, %v2301
          %v2303 = vrot.slane %v2297, %v2302
          %v2304 = vlaneseq
          %v2305 = vshrl.u32 %v2304, 7
          %v2306 = vsub.s32 2, %v2305
          %v2307 = vrot.slane %v2297, %v2306
          %v2310 = vlaneseq
          %v2311 = vshrl.u32 %v2310, 7
          %v2312 = vsub.s32 0, %v2311
          %v2313 = vrot.slane %v2303, %v2312
          %v2314 = vlaneseq
          %v2315 = vshrl.u32 %v2314, 7
          %v2316 = vsub.s32 0, %v2315
          %v2317 = vrot.slane %v2307, %v2316
          %v2320 = vcombine.low %v2313, %v2317
          %v2322 = vmul.f32 %v2298, %v2320
          %2323 = vst [vmem:[%s259] sm:$0xff] %v2322
          %v2325 = vunpack.c.l.s4 1966171168
          %v2326 = vunpack.c.0.s8 %v2325
          %v2327 = vlaneseq
          %v2328 = vshrl.u32 %v2327, 7
          %v2329 = vsub.s32 %v2326, %v2328
          %v2330 = vrot.slane %v2297, %v2329
          %v2332 = vlaneseq
          %vm2333 = vcmp.ge.s32.totalorder %v2332, 0
          %vm2334 = vcmp.lt.s32.totalorder %v2332, 256
          %vm2335 = vmand %vm2333, %vm2334
          %2336 = vst.msk [vmem:[%s266] sm:$0x3] %vm2335, %v2330
        $region44: #{tpu_custom_call.1} parent=27 // pred_fallthru
          _
        %s2337 = sand.u32 %s112, 1
        %s2338 = scalar_lea.sflag [#allocation5], %s2337
        %s2339 = sand.u32 %s112, 1
        %s2340 = smul.addr %s2339, 8
        %s2341 = scalar_lea.vmem [#allocation8], %s2340
        %s2342 = sand.u32 %s140, 1
        %s2343 = scalar_lea.sflag [#allocation10], %s2342
        %s2344 = sand.u32 %s140, 1
        %s2345 = smul.addr %s2344, 2
        %s2346 = scalar_lea.vmem [#allocation9], %s2345
        // Predicated region
        $region45: #{tpu_custom_call.1} parent=27 // pred_check
          %p2347 = pneg %p122
        $region46: #{tpu_custom_call.1} parent=27 // pred_check_branch
          %2349 = sbr.rel (%p2347) target = $region48
        $region47: #{tpu_custom_call.1} parent=27 // pred_region
          %s2350 = smul.u32 2, %s33
          %s2352 = ssub.s32 128, 128
          %2353 = vsyncadd %s2338, %s2352
          %s2354 = smul.addr %s32, 2
          %s2355 = sadd.s32 %s2350, %s2354
          %s2356 = smul.addr %s2355, 64
          %s2357 = scalar_lea.hbm %s2, %s2356
          %s2359 = sshll.u32 %s2341, 4
          %s2360 = int_to_ptr.vmem [resolvable:$true] %s2359
          %2362 = dma.vmem_to_hbm [thread:$0]  %s2360, 128, %s2357, %s2338
        $region48: #{tpu_custom_call.1} parent=27 // pred_fallthru
          _
        // Predicated region
        $region49: #{tpu_custom_call.1} parent=27 // pred_check
          %p2363 = pneg %p150
        $region50: #{tpu_custom_call.1} parent=27 // pred_check_branch
          %2365 = sbr.rel (%p2363) target = $region52
        $region51: #{tpu_custom_call.1} parent=27 // pred_region
          %s2366 = smul.u32 2, %s33
          %s2368 = ssub.s32 32, 32
          %2369 = vsyncadd %s2343, %s2368
          %s2370 = smul.addr %s32, 2
          %s2371 = sadd.s32 %s2366, %s2370
          %s2372 = smul.addr %s2371, 16
          %s2373 = scalar_lea.hbm %s3, %s2372
          %s2375 = sshll.u32 %s2346, 4
          %s2376 = int_to_ptr.vmem [resolvable:$true] %s2375
          %2378 = dma.vmem_to_hbm [thread:$0]  %s2376, 32, %s2373, %s2343
        $region52: #{tpu_custom_call.1} parent=27 // pred_fallthru
          _
      $region28: #{tpu_custom_call.1} parent=5 // pred_fallthru
        _
      %p2379 = scmp.le.s32.totalorder 2, %s22
      // Predicated region
      $region53: #{tpu_custom_call.1} parent=5 // pred_check
        %p2380 = pneg %p2379
      $region54: #{tpu_custom_call.1} parent=5 // pred_check_branch
        %2382 = sbr.rel (%p2380) target = $region56
      $region55: #{tpu_custom_call.1} parent=5 // pred_region
        %s2383 = ssub.s32 %s22, 2
        // Predicated region
        $region57: #{tpu_custom_call.1} parent=55 // pred_check
          %p2384 = pneg %p128
        $region58: #{tpu_custom_call.1} parent=55 // pred_check_branch
          %2386 = sbr.rel (%p2384) target = $region60
        $region59: #{tpu_custom_call.1} parent=55 // pred_region
          %s2387 = sand.u32 %s113, 1
          %s2388 = scalar_lea.sflag [#allocation5], %s2387
          %s2389 = sand.u32 %s113, 1
          %s2390 = smul.addr %s2389, 8
          %s2391 = scalar_lea.vmem [#allocation8], %s2390
          %2392 = dma.done %s2388, 128
        $region60: #{tpu_custom_call.1} parent=55 // pred_fallthru
          _
        // Predicated region
        $region61: #{tpu_custom_call.1} parent=55 // pred_check
          %p2393 = pneg %p156
        $region62: #{tpu_custom_call.1} parent=55 // pred_check_branch
          %2395 = sbr.rel (%p2393) target = $region64
        $region63: #{tpu_custom_call.1} parent=55 // pred_region
          %s2396 = sand.u32 %s141, 1
          %s2397 = scalar_lea.sflag [#allocation10], %s2396
          %s2398 = sand.u32 %s141, 1
          %s2399 = smul.addr %s2398, 2
          %s2400 = scalar_lea.vmem [#allocation9], %s2399
          %2401 = dma.done %s2397, 32
        $region64: #{tpu_custom_call.1} parent=55 // pred_fallthru
          _
      $region56: #{tpu_custom_call.1} parent=5 // pred_fallthru
        _
    $region6: #{tpu_custom_call.1} parent=1 // loop_footer
      %s26 = sadd.s32 1, %s22
    $region7: #{tpu_custom_call.1} parent=1 // loop_footer_branch
      %21 = sbr.rel target = $region3
    $region8: #{tpu_custom_call.1} parent=1 // loop_exit
      _
    %2402 = vsyncpa [#allocation4], 1
    %s2403 = scalar_lea.sflag [#allocation4], 1
    %2404 = vsyncpa %s2403, 1
    %2405 = vsyncpa [#allocation7], 1
    %s2406 = scalar_lea.sflag [#allocation7], 1
    %2407 = vsyncpa %s2406, 1
    %2408 = vsyncpa [#allocation5], 1
    %s2409 = scalar_lea.sflag [#allocation5], 1
    %2410 = vsyncpa %s2409, 1
    %2411 = vsyncpa [#allocation10], 1
    %s2412 = scalar_lea.sflag [#allocation10], 1
    %2413 = vsyncpa %s2412, 1

</llo_original>
